<compile_context>
chip_gen: v6e
topology: v6e:2x2x1
jax: 0.10.0
libtpu: 0.0.40
codegen_flags: <defaults>
</compile_context>

<pallas_src>
import functools

import jax
import jax.numpy as jnp
from jax import lax
from jax.experimental import pallas as pl
from jax.experimental.pallas import tpu as pltpu


def _bottleneck_kernel(x_c_ref, x_top_ref, x_bot_ref,
                       w1_ref, w2_ref, w3_ref,
                       t1_ref, t2_ref, t3_ref,
                       o_ref, *, W, TH, halo_rows):
  THW = TH * W
  EXT = (TH + 2) * W

  t = pl.program_id(1)
  last = pl.num_programs(1) - 1

  x_c = x_c_ref[0]                                 # (THW, Cin)  f32
  x_top = x_top_ref[0][halo_rows - W:, :]          # (W, Cin)    row above tile
  x_bot = x_bot_ref[0][:W, :]                      # (W, Cin)    row below tile

  # ---- conv1 (1x1, BN scale folded into weights) + shift + ReLU -----------
  # Computed on the tile rows plus the one-row halo above/below.
  x_ext = jnp.concatenate([x_top, x_c, x_bot], axis=0)          # (EXT, Cin)
  y = jnp.dot(x_ext.astype(jnp.bfloat16), w1_ref[...],
              preferred_element_type=jnp.float32)
  y = jnp.maximum(y + t1_ref[...], 0.0)                         # (EXT, Cmid) f32

  # Zero halo rows that lie outside the image (3x3 conv zero padding).
  row = lax.broadcasted_iota(jnp.int32, (EXT, 1), 0)
  valid = ((row >= W) | (t != 0)) & ((row < EXT - W) | (t != last))
  y = jnp.where(valid, y, 0.0)

  # ---- conv2 (3x3, stride 1, pad 1) + shift + ReLU -------------------------
  # Horizontal taps: 2 rolls + 2 column-masked selects (dx = -1, 0, +1).
  col = row % W
  y_m1 = jnp.where(col != 0, pltpu.roll(y, shift=1, axis=0), 0.0)          # y[i-1]
  y_p1 = jnp.where(col != W - 1, pltpu.roll(y, shift=EXT - 1, axis=0), 0.0)  # y[i+1]

  # Stack horizontal taps along channels; vertical taps are static row slices.
  y_wide = jnp.concatenate([y_m1, y, y_p1], axis=-1).astype(jnp.bfloat16)  # (EXT, 3*Cmid)

  acc = jnp.dot(y_wide[0:THW], w2_ref[0], preferred_element_type=jnp.float32)
  acc += jnp.dot(y_wide[W:W + THW], w2_ref[1], preferred_element_type=jnp.float32)
  acc += jnp.dot(y_wide[2 * W:2 * W + THW], w2_ref[2],
                 preferred_element_type=jnp.float32)
  y2 = jnp.maximum(acc + t2_ref[...], 0.0).astype(jnp.bfloat16)            # (THW, Cmid)

  # ---- conv3 (1x1, expansion) + shift + residual + ReLU --------------------
  y3 = jnp.dot(y2, w3_ref[...], preferred_element_type=jnp.float32)
  out = jnp.maximum(y3 + t3_ref[...] + x_c, 0.0)
  o_ref[0] = out.astype(o_ref.dtype)


def _pick_block_rows(H, W, requested):
  """Pick TH (image rows per tile). Must divide H; TH*W must be 8-aligned."""
  if W % 8 != 0:
    return H                     # single tile: every block dim == full array dim
  if requested is not None:
    target = max(1, min(int(requested), H))
  else:
    target = max(1, min(H, pl.cdiv(1024, W)))   # ~1024 spatial positions / tile
  best = 1
  for d in range(1, H + 1):
    if H % d == 0 and d <= target:
      best = d
  return best


def bottleneck_block(x_nchw, params, *, block_rows=None, interpret=False):
  """x_nchw: (N, Cin, H, W) float32. Returns (N, Cout, H, W)."""
  N, Cin, H, W = x_nchw.shape

  w1, b1, w2, b2, w3, b3 = (params[k] for k in ("w1", "b1", "w2", "b2", "w3", "b3"))
  Cmid = w1.shape[0]
  Cout = w3.shape[0]
  assert Cout == Cin, "identity path requires Cin == Cout (no downsample)"
  eps = 1e-5

  def fold_bn(gamma, beta, mean, var, bias):
    scale = (gamma / jnp.sqrt(var + eps)).astype(jnp.float32)        # (C,)
    shift = (beta + scale * (bias - mean)).astype(jnp.float32)       # (C,)
    return scale, shift.reshape(1, -1)

  s1, t1 = fold_bn(params["g1"], params["be1"], params["m1"], params["v1"], b1)
  s2, t2 = fold_bn(params["g2"], params["be2"], params["m2"], params["v2"], b2)
  s3, t3 = fold_bn(params["g3"], params["be3"], params["m3"], params["v3"], b3)

  # Fold BN scales into conv weights (per output channel); cast to bf16 for MXU.
  w1_mm = (jnp.transpose(w1[:, :, 0, 0], (1, 0)) * s1[None, :]).astype(jnp.bfloat16)
  w2_t = jnp.transpose(w2, (2, 3, 1, 0)) * s2[None, None, None, :]   # (KH,KW,Ci,Co)
  w2_mm = w2_t.reshape(3, 3 * Cmid, Cmid).astype(jnp.bfloat16)       # ky -> (3*Cmid, Cmid)
  w3_mm = (jnp.transpose(w3[:, :, 0, 0], (1, 0)) * s3[None, :]).astype(jnp.bfloat16)

  # Spatial tiling along H.
  TH = _pick_block_rows(H, W, block_rows)
  T = H // TH
  THW = TH * W
  halo_rows = W if (W % 8 == 0) else THW

  # NCHW -> NHWC -> (N, H*W, C); channels on the lane axis.
  x_flat = jnp.transpose(x_nchw, (0, 2, 3, 1)).reshape(N, H * W, Cin).astype(jnp.float32)

  if halo_rows == W:
    # halo blocks are single image rows (block unit = W flattened positions)
    top_map = lambda n, t: (n, jnp.maximum(t * TH - 1, 0), 0)
    bot_map = lambda n, t: (n, jnp.minimum(t * TH + TH, H - 1), 0)
  else:
    # fallback (W not 8-aligned => single tile): halo block = neighboring tile
    top_map = lambda n, t: (n, jnp.maximum(t - 1, 0), 0)
    bot_map = lambda n, t: (n, jnp.minimum(t + 1, T - 1), 0)

  kernel = functools.partial(_bottleneck_kernel, W=W, TH=TH, halo_rows=halo_rows)
  full = lambda shape: pl.BlockSpec(shape, lambda n, t, _s=shape: (0,) * len(_s))

  out_flat = pl.pallas_call(
      kernel,
      out_shape=jax.ShapeDtypeStruct((N, H * W, Cout), jnp.float32),
      grid_spec=pltpu.PrefetchScalarGridSpec(
          num_scalar_prefetch=0,
          grid=(N, T),
          in_specs=[
              pl.BlockSpec((1, THW, Cin), lambda n, t: (n, t, 0)),   # tile rows
              pl.BlockSpec((1, halo_rows, Cin), top_map),            # halo above
              pl.BlockSpec((1, halo_rows, Cin), bot_map),            # halo below
              full((Cin, Cmid)),
              full((3, 3 * Cmid, Cmid)),
              full((Cmid, Cout)),
              full((1, Cmid)), full((1, Cmid)), full((1, Cout)),
          ],
          out_specs=pl.BlockSpec((1, THW, Cout), lambda n, t: (n, t, 0)),
      ),
      compiler_params=pltpu.CompilerParams(
          dimension_semantics=("parallel", "parallel"),
          vmem_limit_bytes=64 * 1024 * 1024),
      interpret=interpret,
  )(x_flat, x_flat, x_flat, w1_mm, w2_mm, w3_mm, t1, t2, t3)

  # (N, H*W, Cout) -> NCHW
  return jnp.transpose(out_flat.reshape(N, H, W, Cout), (0, 3, 1, 2))


def bottleneck_reference(x, params):
  """Pure-JAX f32 reference (eval-mode BN), NCHW."""
  eps = 1e-5
  dn = ("NCHW", "OIHW", "NCHW")

  def conv(x, w, b, pad):
    y = lax.conv_general_dilated(x, w, window_strides=(1, 1),
                                 padding=[(pad, pad), (pad, pad)],
                                 dimension_numbers=dn)
    return y + b.reshape(1, -1, 1, 1)

  def bn(x, g, be, m, v):
    return (x - m.reshape(1, -1, 1, 1)) / jnp.sqrt(v.reshape(1, -1, 1, 1) + eps) \
        * g.reshape(1, -1, 1, 1) + be.reshape(1, -1, 1, 1)

  identity = x
  y = jax.nn.relu(bn(conv(x, params["w1"], params["b1"], 0),
                     params["g1"], params["be1"], params["m1"], params["v1"]))
  y = jax.nn.relu(bn(conv(y, params["w2"], params["b2"], 1),
                     params["g2"], params["be2"], params["m2"], params["v2"]))
  y = bn(conv(y, params["w3"], params["b3"], 0),
         params["g3"], params["be3"], params["m3"], params["v3"])
  return jax.nn.relu(y + identity)


def make_params(key, in_channels, intermediate_channels):
  exp = 4
  cout = intermediate_channels * exp
  ks = jax.random.split(key, 16)
  n = lambda k, s, sc=0.1: (jax.random.normal(k, s, jnp.float32) * sc)
  return {
      "w1": n(ks[0], (intermediate_channels, in_channels, 1, 1)),
      "b1": n(ks[1], (intermediate_channels,)),
      "w2": n(ks[2], (intermediate_channels, intermediate_channels, 3, 3)),
      "b2": n(ks[3], (intermediate_channels,)),
      "w3": n(ks[4], (cout, intermediate_channels, 1, 1)),
      "b3": n(ks[5], (cout,)),
      "g1": 1.0 + n(ks[6], (intermediate_channels,)),
      "be1": n(ks[7], (intermediate_channels,)),
      "m1": n(ks[8], (intermediate_channels,)),
      "v1": 0.5 + jnp.abs(n(ks[9], (intermediate_channels,))),
      "g2": 1.0 + n(ks[10], (intermediate_channels,)),
      "be2": n(ks[11], (intermediate_channels,)),
      "m2": n(ks[12], (intermediate_channels,)),
      "v2": 0.5 + jnp.abs(n(ks[13], (intermediate_channels,))),
      "g3": 1.0 + n(ks[14], (cout,)),
      "be3": n(ks[15], (cout,)),
      "m3": jnp.zeros((cout,), jnp.float32),
      "v3": jnp.ones((cout,), jnp.float32),
  }


if __name__ == "__main__":
  key = jax.random.PRNGKey(0)
  k_x, k_p = jax.random.split(key)

  N, Cin, H, W = 2, 16, 16, 16         # in_channels = intermediate*4 -> residual valid
  intermediate = 4
  x = jax.random.normal(k_x, (N, Cin, H, W), jnp.float32)
  params = make_params(k_p, Cin, intermediate)

  ref = jax.block_until_ready(bottleneck_reference(x, params))

  # Tiled path (2 spatial tiles, exercises the halo logic).
  out_tiled = jax.block_until_ready(bottleneck_block(x, params, block_rows=8))
  # Auto tile selection (single tile at this size).
  out_auto = jax.block_until_ready(bottleneck_block(x, params))

  assert out_tiled.shape == (N, Cin, H, W)
  assert out_auto.shape == (N, Cin, H, W)
  # bf16 MXU inputs -> loosened tolerance vs the f32 reference.
  assert jnp.allclose(out_tiled, ref, atol=3e-2, rtol=3e-2), \
      f"tiled max abs err {jnp.max(jnp.abs(out_tiled - ref))}"
  assert jnp.allclose(out_auto, ref, atol=3e-2, rtol=3e-2), \
      f"auto max abs err {jnp.max(jnp.abs(out_auto - ref))}"
  print("KERNEL_OK")
</pallas_src>

<mosaic_0001>
module attributes {stable_mosaic.version = 11 : i64} {
  func.func @_bottleneck_kernel(%arg0: i32, %arg1: i32, %arg2: memref<1x128x16xf32, #tpu.memory_space<vmem>>, %arg3: memref<1x16x16xf32, #tpu.memory_space<vmem>>, %arg4: memref<1x16x16xf32, #tpu.memory_space<vmem>>, %arg5: memref<16x4xbf16, #tpu.memory_space<vmem>>, %arg6: memref<3x12x4xbf16, #tpu.memory_space<vmem>>, %arg7: memref<4x16xbf16, #tpu.memory_space<vmem>>, %arg8: memref<1x4xf32, #tpu.memory_space<vmem>>, %arg9: memref<1x4xf32, #tpu.memory_space<vmem>>, %arg10: memref<1x16xf32, #tpu.memory_space<vmem>>, %arg11: memref<1x128x16xf32, #tpu.memory_space<vmem>>) attributes {dimension_semantics = [#tpu.dimension_semantics<parallel>, #tpu.dimension_semantics<parallel>], iteration_bounds = array<i64: 2, 2>, scalar_prefetch = 0 : i64, scratch_operands = 0 : i64, tpu.core_type = #tpu.core_type<tc>, window_params = [{transform_indices = @transform_0, window_bounds = array<i64: 1, 128, 16>}, {transform_indices = @transform_1, window_bounds = array<i64: 1, 16, 16>}, {transform_indices = @transform_2, window_bounds = array<i64: 1, 16, 16>}, {pipeline_mode = #tpu.pipeline_mode<synchronous>, transform_indices = @transform_3, window_bounds = array<i64: 16, 4>}, {pipeline_mode = #tpu.pipeline_mode<synchronous>, transform_indices = @transform_4, window_bounds = array<i64: 3, 12, 4>}, {pipeline_mode = #tpu.pipeline_mode<synchronous>, transform_indices = @transform_5, window_bounds = array<i64: 4, 16>}, {pipeline_mode = #tpu.pipeline_mode<synchronous>, transform_indices = @transform_6, window_bounds = array<i64: 1, 4>}, {pipeline_mode = #tpu.pipeline_mode<synchronous>, transform_indices = @transform_7, window_bounds = array<i64: 1, 4>}, {pipeline_mode = #tpu.pipeline_mode<synchronous>, transform_indices = @transform_8, window_bounds = array<i64: 1, 16>}, {transform_indices = @transform_9, window_bounds = array<i64: 1, 128, 16>}]} {
    %c0 = arith.constant 0 : index
    %c0_0 = arith.constant 0 : index
    %c0_1 = arith.constant 0 : index
    %0 = vector.load %arg2[%c0, %c0_0, %c0_1] : memref<1x128x16xf32, #tpu.memory_space<vmem>>, vector<1x128x16xf32>
    %1 = vector.shape_cast %0 : vector<1x128x16xf32> to vector<128x16xf32>
    %c0_2 = arith.constant 0 : index
    %c0_3 = arith.constant 0 : index
    %c0_4 = arith.constant 0 : index
    %2 = vector.load %arg3[%c0_2, %c0_3, %c0_4] : memref<1x16x16xf32, #tpu.memory_space<vmem>>, vector<1x16x16xf32>
    %3 = vector.shape_cast %2 : vector<1x16x16xf32> to vector<16x16xf32>
    %c0_5 = arith.constant 0 : index
    %c0_6 = arith.constant 0 : index
    %c0_7 = arith.constant 0 : index
    %4 = vector.load %arg4[%c0_5, %c0_6, %c0_7] : memref<1x16x16xf32, #tpu.memory_space<vmem>>, vector<1x16x16xf32>
    %5 = vector.shape_cast %4 : vector<1x16x16xf32> to vector<16x16xf32>
    %6 = tpu.concatenate %3, %1, %5 in 0 : vector<16x16xf32>, vector<128x16xf32>, vector<16x16xf32> -> vector<160x16xf32>
    %7 = arith.truncf %6 : vector<160x16xf32> to vector<160x16xbf16>
    %c0_8 = arith.constant 0 : index
    %c0_9 = arith.constant 0 : index
    %8 = vector.load %arg5[%c0_8, %c0_9] : memref<16x4xbf16, #tpu.memory_space<vmem>>, vector<16x4xbf16>
    %cst = arith.constant dense<0.000000e+00> : vector<160x4xf32>
    %9 = tpu.matmul %7, %8, %cst {dimension_numbers = #tpu.dot_dimension_numbers<[1], [0], [0], [1], [0, 0, 1, 1], [], []>} : vector<160x16xbf16>, vector<16x4xbf16>, vector<160x4xf32> -> vector<160x4xf32>
    %c0_10 = arith.constant 0 : index
    %c0_11 = arith.constant 0 : index
    %10 = vector.load %arg8[%c0_10, %c0_11] : memref<1x4xf32, #tpu.memory_space<vmem>>, vector<1x4xf32>
    %11 = vector.broadcast %10 : vector<1x4xf32> to vector<160x4xf32>
    %12 = arith.addf %9, %11 : vector<160x4xf32>
    %cst_12 = arith.constant 0.000000e+00 : f32
    %13 = vector.broadcast %cst_12 : f32 to vector<160x4xf32>
    %14 = arith.maximumf %12, %13 : vector<160x4xf32>
    %15 = tpu.iota {dimensions = array<i32: 0>} : vector<160x1xi32>
    %c16_i32 = arith.constant 16 : i32
    %16 = vector.broadcast %c16_i32 : i32 to vector<160x1xi32>
    %17 = arith.cmpi sge, %15, %16 : vector<160x1xi32>
    %c0_i32 = arith.constant 0 : i32
    %18 = arith.cmpi ne, %arg1, %c0_i32 : i32
    %19 = vector.broadcast %18 : i1 to vector<160x1xi1>
    %20 = arith.ori %17, %19 : vector<160x1xi1>
    %c144_i32 = arith.constant 144 : i32
    %21 = vector.broadcast %c144_i32 : i32 to vector<160x1xi32>
    %22 = arith.cmpi slt, %15, %21 : vector<160x1xi32>
    %c1_i32 = arith.constant 1 : i32
    %23 = arith.cmpi ne, %arg1, %c1_i32 : i32
    %24 = vector.broadcast %23 : i1 to vector<160x1xi1>
    %25 = arith.ori %22, %24 : vector<160x1xi1>
    %26 = arith.andi %20, %25 : vector<160x1xi1>
    %cst_13 = arith.constant 0.000000e+00 : f32
    %27 = vector.shape_cast %26 : vector<160x1xi1> to vector<160x1xi1>
    %28 = vector.broadcast %27 : vector<160x1xi1> to vector<160x4xi1>
    %29 = vector.broadcast %cst_13 : f32 to vector<160x4xf32>
    %30 = arith.select %28, %14, %29 : vector<160x4xi1>, vector<160x4xf32>
    %c16_i32_14 = arith.constant 16 : i32
    %c0_i32_15 = arith.constant 0 : i32
    %31 = arith.cmpi eq, %c16_i32_14, %c0_i32_15 : i32
    %c1_i32_16 = arith.constant 1 : i32
    %32 = arith.select %31, %c1_i32_16, %c16_i32_14 : i32
    %33 = vector.broadcast %32 : i32 to vector<160x1xi32>
    %34 = arith.remsi %15, %33 : vector<160x1xi32>
    %c0_i32_17 = arith.constant 0 : i32
    %35 = vector.broadcast %c0_i32_17 : i32 to vector<160x1xi32>
    %36 = arith.cmpi ne, %34, %35 : vector<160x1xi32>
    %c0_i32_18 = arith.constant 0 : i32
    %37 = vector.broadcast %c0_i32_18 : i32 to vector<160x1xi32>
    %38 = arith.cmpi slt, %34, %37 : vector<160x1xi32>
    %c0_i32_19 = arith.constant 0 : i32
    %39 = arith.cmpi slt, %32, %c0_i32_19 : i32
    %40 = vector.broadcast %39 : i1 to vector<160x1xi1>
    %41 = vector.broadcast %40 : vector<160x1xi1> to vector<160x1xi1>
    %42 = arith.xori %38, %41 : vector<160x1xi1>
    %43 = arith.andi %42, %36 : vector<160x1xi1>
    %44 = vector.broadcast %32 : i32 to vector<160x1xi32>
    %45 = arith.addi %34, %44 : vector<160x1xi32>
    %46 = arith.select %43, %45, %34 : vector<160x1xi1>, vector<160x1xi32>
    %c0_i32_20 = arith.constant 0 : i32
    %47 = vector.broadcast %c0_i32_20 : i32 to vector<160x1xi32>
    %48 = arith.cmpi ne, %46, %47 : vector<160x1xi32>
    %c1_i32_21 = arith.constant 1 : i32
    %49 = tpu.dynamic_rotate %30 by %c1_i32_21 dim 0 : vector<160x4xf32>, i32 -> vector<160x4xf32>
    %cst_22 = arith.constant 0.000000e+00 : f32
    %50 = vector.shape_cast %48 : vector<160x1xi1> to vector<160x1xi1>
    %51 = vector.broadcast %50 : vector<160x1xi1> to vector<160x4xi1>
    %52 = vector.broadcast %cst_22 : f32 to vector<160x4xf32>
    %53 = arith.select %51, %49, %52 : vector<160x4xi1>, vector<160x4xf32>
    %c15_i32 = arith.constant 15 : i32
    %54 = vector.broadcast %c15_i32 : i32 to vector<160x1xi32>
    %55 = arith.cmpi ne, %46, %54 : vector<160x1xi32>
    %c159_i32 = arith.constant 159 : i32
    %56 = tpu.dynamic_rotate %30 by %c159_i32 dim 0 : vector<160x4xf32>, i32 -> vector<160x4xf32>
    %cst_23 = arith.constant 0.000000e+00 : f32
    %57 = vector.shape_cast %55 : vector<160x1xi1> to vector<160x1xi1>
    %58 = vector.broadcast %57 : vector<160x1xi1> to vector<160x4xi1>
    %59 = vector.broadcast %cst_23 : f32 to vector<160x4xf32>
    %60 = arith.select %58, %56, %59 : vector<160x4xi1>, vector<160x4xf32>
    %61 = tpu.concatenate %53, %30, %60 in 1 : vector<160x4xf32>, vector<160x4xf32>, vector<160x4xf32> -> vector<160x12xf32>
    %62 = arith.truncf %61 : vector<160x12xf32> to vector<160x12xbf16>
    %63 = vector.extract_strided_slice %62 {offsets = [0, 0], sizes = [128, 12], strides = [1, 1]} : vector<160x12xbf16> to vector<128x12xbf16>
    %c0_24 = arith.constant 0 : index
    %c0_25 = arith.constant 0 : index
    %c0_26 = arith.constant 0 : index
    %64 = vector.load %arg6[%c0_24, %c0_25, %c0_26] : memref<3x12x4xbf16, #tpu.memory_space<vmem>>, vector<1x12x4xbf16>
    %65 = vector.shape_cast %64 : vector<1x12x4xbf16> to vector<12x4xbf16>
    %cst_27 = arith.constant dense<0.000000e+00> : vector<128x4xf32>
    %66 = tpu.matmul %63, %65, %cst_27 {dimension_numbers = #tpu.dot_dimension_numbers<[1], [0], [0], [1], [0, 0, 1, 1], [], []>} : vector<128x12xbf16>, vector<12x4xbf16>, vector<128x4xf32> -> vector<128x4xf32>
    %67 = vector.extract_strided_slice %62 {offsets = [16, 0], sizes = [128, 12], strides = [1, 1]} : vector<160x12xbf16> to vector<128x12xbf16>
    %c1 = arith.constant 1 : index
    %c0_28 = arith.constant 0 : index
    %c0_29 = arith.constant 0 : index
    %68 = vector.load %arg6[%c1, %c0_28, %c0_29] : memref<3x12x4xbf16, #tpu.memory_space<vmem>>, vector<1x12x4xbf16>
    %69 = vector.shape_cast %68 : vector<1x12x4xbf16> to vector<12x4xbf16>
    %cst_30 = arith.constant dense<0.000000e+00> : vector<128x4xf32>
    %70 = tpu.matmul %67, %69, %cst_30 {dimension_numbers = #tpu.dot_dimension_numbers<[1], [0], [0], [1], [0, 0, 1, 1], [], []>} : vector<128x12xbf16>, vector<12x4xbf16>, vector<128x4xf32> -> vector<128x4xf32>
    %71 = arith.addf %66, %70 : vector<128x4xf32>
    %72 = vector.extract_strided_slice %62 {offsets = [32, 0], sizes = [128, 12], strides = [1, 1]} : vector<160x12xbf16> to vector<128x12xbf16>
    %c2 = arith.constant 2 : index
    %c0_31 = arith.constant 0 : index
    %c0_32 = arith.constant 0 : index
    %73 = vector.load %arg6[%c2, %c0_31, %c0_32] : memref<3x12x4xbf16, #tpu.memory_space<vmem>>, vector<1x12x4xbf16>
    %74 = vector.shape_cast %73 : vector<1x12x4xbf16> to vector<12x4xbf16>
    %cst_33 = arith.constant dense<0.000000e+00> : vector<128x4xf32>
    %75 = tpu.matmul %72, %74, %cst_33 {dimension_numbers = #tpu.dot_dimension_numbers<[1], [0], [0], [1], [0, 0, 1, 1], [], []>} : vector<128x12xbf16>, vector<12x4xbf16>, vector<128x4xf32> -> vector<128x4xf32>
    %76 = arith.addf %71, %75 : vector<128x4xf32>
    %c0_34 = arith.constant 0 : index
    %c0_35 = arith.constant 0 : index
    %77 = vector.load %arg9[%c0_34, %c0_35] : memref<1x4xf32, #tpu.memory_space<vmem>>, vector<1x4xf32>
    %78 = vector.broadcast %77 : vector<1x4xf32> to vector<128x4xf32>
    %79 = arith.addf %76, %78 : vector<128x4xf32>
    %cst_36 = arith.constant 0.000000e+00 : f32
    %80 = vector.broadcast %cst_36 : f32 to vector<128x4xf32>
    %81 = arith.maximumf %79, %80 : vector<128x4xf32>
    %82 = arith.truncf %81 : vector<128x4xf32> to vector<128x4xbf16>
    %c0_37 = arith.constant 0 : index
    %c0_38 = arith.constant 0 : index
    %83 = vector.load %arg7[%c0_37, %c0_38] : memref<4x16xbf16, #tpu.memory_space<vmem>>, vector<4x16xbf16>
    %cst_39 = arith.constant dense<0.000000e+00> : vector<128x16xf32>
    %84 = tpu.matmul %82, %83, %cst_39 {dimension_numbers = #tpu.dot_dimension_numbers<[1], [0], [0], [1], [0, 0, 1, 1], [], []>} : vector<128x4xbf16>, vector<4x16xbf16>, vector<128x16xf32> -> vector<128x16xf32>
    %c0_40 = arith.constant 0 : index
    %c0_41 = arith.constant 0 : index
    %85 = vector.load %arg10[%c0_40, %c0_41] : memref<1x16xf32, #tpu.memory_space<vmem>>, vector<1x16xf32>
    %86 = vector.broadcast %85 : vector<1x16xf32> to vector<128x16xf32>
    %87 = arith.addf %84, %86 : vector<128x16xf32>
    %88 = arith.addf %87, %1 : vector<128x16xf32>
    %cst_42 = arith.constant 0.000000e+00 : f32
    %89 = vector.broadcast %cst_42 : f32 to vector<128x16xf32>
    %90 = arith.maximumf %88, %89 : vector<128x16xf32>
    %c0_43 = arith.constant 0 : index
    %c0_44 = arith.constant 0 : index
    %c0_45 = arith.constant 0 : index
    %91 = vector.load %arg11[%c0_43, %c0_44, %c0_45] : memref<1x128x16xf32, #tpu.memory_space<vmem>>, vector<1x128x16xf32>
    %92 = vector.shape_cast %91 : vector<1x128x16xf32> to vector<128x16xf32>
    %93 = vector.shape_cast %90 : vector<128x16xf32> to vector<1x128x16xf32>
    tpu.vector_store %arg11[%c0_43, %c0_44, %c0_45], %93 {strides = array<i32>} : memref<1x128x16xf32, #tpu.memory_space<vmem>>, vector<1x128x16xf32>,
    return
  }
  func.func @transform_0(%arg0: i32, %arg1: i32) -> (i32, i32, i32) {
    %c0_i32 = arith.constant 0 : i32
    %c0_i32_0 = arith.constant 0 : i32
    return %arg0, %arg1, %c0_i32 : i32, i32, i32
  }
  func.func @transform_1(%arg0: i32, %arg1: i32) -> (i32, i32, i32) {
    %c8_i32 = arith.constant 8 : i32
    %0 = arith.muli %arg1, %c8_i32 : i32
    %c1_i32 = arith.constant 1 : i32
    %1 = arith.subi %0, %c1_i32 : i32
    %c0_i32 = arith.constant 0 : i32
    %2 = arith.maxsi %1, %c0_i32 : i32
    %c0_i32_0 = arith.constant 0 : i32
    %c0_i32_1 = arith.constant 0 : i32
    return %arg0, %2, %c0_i32_0 : i32, i32, i32
  }
  func.func @transform_2(%arg0: i32, %arg1: i32) -> (i32, i32, i32) {
    %c8_i32 = arith.constant 8 : i32
    %0 = arith.muli %arg1, %c8_i32 : i32
    %c8_i32_0 = arith.constant 8 : i32
    %1 = arith.addi %0, %c8_i32_0 : i32
    %c15_i32 = arith.constant 15 : i32
    %2 = arith.minsi %1, %c15_i32 : i32
    %c0_i32 = arith.constant 0 : i32
    %c0_i32_1 = arith.constant 0 : i32
    return %arg0, %2, %c0_i32 : i32, i32, i32
  }
  func.func @transform_3(%arg0: i32, %arg1: i32) -> (i32, i32) {
    %c0_i32 = arith.constant 0 : i32
    %c0_i32_0 = arith.constant 0 : i32
    %c0_i32_1 = arith.constant 0 : i32
    return %c0_i32, %c0_i32_0 : i32, i32
  }
  func.func @transform_4(%arg0: i32, %arg1: i32) -> (i32, i32, i32) {
    %c0_i32 = arith.constant 0 : i32
    %c0_i32_0 = arith.constant 0 : i32
    %c0_i32_1 = arith.constant 0 : i32
    %c0_i32_2 = arith.constant 0 : i32
    return %c0_i32, %c0_i32_0, %c0_i32_1 : i32, i32, i32
  }
  func.func @transform_5(%arg0: i32, %arg1: i32) -> (i32, i32) {
    %c0_i32 = arith.constant 0 : i32
    %c0_i32_0 = arith.constant 0 : i32
    %c0_i32_1 = arith.constant 0 : i32
    return %c0_i32, %c0_i32_0 : i32, i32
  }
  func.func @transform_6(%arg0: i32, %arg1: i32) -> (i32, i32) {
    %c0_i32 = arith.constant 0 : i32
    %c0_i32_0 = arith.constant 0 : i32
    %c0_i32_1 = arith.constant 0 : i32
    return %c0_i32, %c0_i32_0 : i32, i32
  }
  func.func @transform_7(%arg0: i32, %arg1: i32) -> (i32, i32) {
    %c0_i32 = arith.constant 0 : i32
    %c0_i32_0 = arith.constant 0 : i32
    %c0_i32_1 = arith.constant 0 : i32
    return %c0_i32, %c0_i32_0 : i32, i32
  }
  func.func @transform_8(%arg0: i32, %arg1: i32) -> (i32, i32) {
    %c0_i32 = arith.constant 0 : i32
    %c0_i32_0 = arith.constant 0 : i32
    %c0_i32_1 = arith.constant 0 : i32
    return %c0_i32, %c0_i32_0 : i32, i32
  }
  func.func @transform_9(%arg0: i32, %arg1: i32) -> (i32, i32, i32) {
    %c0_i32 = arith.constant 0 : i32
    %c0_i32_0 = arith.constant 0 : i32
    return %arg0, %arg1, %c0_i32 : i32, i32, i32
  }
}

</mosaic_0001>

<llo_original>
// kernel: tpu_custom_call.1
$region0: #{tpu_custom_call.1}
  #allocation0 [shape = 'u32[]', space=smem, size = 0x4, offset = 0x4, fixed_abs, tag = 'smem constant byte address 0x4 - core index']
  #allocation1 [shape = 'u32[144,128]{1,0:T(1,128)}', space=vmem, size = 0x12000, scoped, tag = 'internal scratch']
  %s0 = inlined_call_operand.vmem [shape: f32[2,256,16], index: 0, kind: input, shape index: {}]
  %s1 = inlined_call_operand.vmem [shape: f32[2,256,16], index: 1, kind: input, shape index: {}]
  %s2 = inlined_call_operand.vmem [shape: f32[2,256,16], index: 2, kind: input, shape index: {}]
  %s3 = inlined_call_operand.vmem [shape: bf16[16,4], index: 3, kind: input, shape index: {}]
  %s4 = inlined_call_operand.vmem [shape: bf16[3,12,4], index: 4, kind: input, shape index: {}]
  %s5 = inlined_call_operand.vmem [shape: bf16[4,16], index: 5, kind: input, shape index: {}]
  %s6 = inlined_call_operand.vmem [shape: f32[1,4], index: 6, kind: input, shape index: {}]
  %s7 = inlined_call_operand.vmem [shape: f32[1,4], index: 7, kind: input, shape index: {}]
  %s8 = inlined_call_operand.vmem [shape: f32[1,16], index: 8, kind: input, shape index: {}]
  %s9 = inlined_call_operand.vmem [shape: f32[2,256,16], index: 9, kind: output, shape index: {}]
  %s10 = sld [smem:[#allocation0]]
  $region69: #{tpu_custom_call.1} parent=0
    _
  %s12 = ssub.s32 1, %s10
  %s13 = scalar_select 0, %s12, %s10
  loop: start=0, step=1, limit=6
  $region2: #{tpu_custom_call.1} parent=0 // loop_pre_header
    _
  $region3: #{tpu_custom_call.1} parent=0 // loop_header
    %s15 = sphi 0, %s19
    %p16 = scmp.ge.s32.totalorder %s15, 6
    %s22 = sphi 0, %s34
    %s23 = sphi 0, %s30
    %s24 = sphi 0, %s22
    %s25 = sphi 0, %s23
    %s26 = sphi 0, %s24
    %s27 = sphi 0, %s25
    %s39 = sphi 0, %s41
    %s42 = sphi 0, %s39
    %s43 = sphi 0, %s42
    %s59 = sphi 0, %s43
    %s75 = sphi 0, %s77
    %s78 = sphi 0, %s75
    %s79 = sphi 0, %s78
    %s95 = sphi 0, %s79
    %s111 = sphi 0, %s113
    %s114 = sphi 0, %s111
    %s115 = sphi 0, %s114
    %s131 = sphi 0, %s115
    %s135 = sphi 0, %s135
    %s137 = sphi 0, %s135
    %s138 = sphi 0, %s137
    %s152 = sphi 0, %s138
    %s156 = sphi 0, %s156
    %s158 = sphi 0, %s156
    %s159 = sphi 0, %s158
    %s173 = sphi 0, %s159
    %s177 = sphi 0, %s177
    %s179 = sphi 0, %s177
    %s180 = sphi 0, %s179
    %s194 = sphi 0, %s180
    %s198 = sphi 0, %s198
    %s200 = sphi 0, %s198
    %s201 = sphi 0, %s200
    %s215 = sphi 0, %s201
    %s219 = sphi 0, %s219
    %s221 = sphi 0, %s219
    %s222 = sphi 0, %s221
    %s236 = sphi 0, %s222
    %s240 = sphi 0, %s240
    %s242 = sphi 0, %s240
    %s243 = sphi 0, %s242
    %s257 = sphi 0, %s243
    %s265 = sphi 0, %s267
    %s268 = sphi 0, %s265
    %s269 = sphi 0, %s268
    %s285 = sphi 0, %s269
  $region4: #{tpu_custom_call.1} parent=0 // loop_header_branch
    %18 = sbr.rel (%p16) target = $region8
  $region5: #{tpu_custom_call.1} parent=0 // loop_body
    %s20 = ssub.s32 %s15, 1
    %s21 = ssub.s32 %s15, 2
    %s28 = sadd.s32 1, %s23
    %p29 = scmp.ge.s32.totalorder %s28, 2
    %s30 = scalar_select %p29, 0, %s28
    %s31 = sadd.s32 1, %s22
    %s32 = scalar_select %p29, %s31, %s22
    %p33 = scmp.ge.s32.totalorder %s32, 2
    %s34 = scalar_select %p33, 0, %s32
    %s35 = ssub.s32 %s22, %s34
    %s36 = ssub.s32 %s23, %s30
    %s37 = sor.u32 %s35, %s36
    %p38 = scmp.eq.s32.totalorder %s37, 0
    %s40 = sadd.s32 %s39, 1
    %s41 = scalar_select %p38, %s39, %s40
    %p44 = pneg %p38
    %p45 = scmp.eq.s32.totalorder %s15, 3
    %p46 = por %p44, %p45
    %p47 = scmp.ne.s32.totalorder %s39, %s42
    %p48 = scmp.eq.s32.totalorder %s15, 0
    %p49 = por %p47, %p48
    %p50 = scmp.ne.s32.totalorder %s39, %s42
    %p51 = scmp.eq.s32.totalorder %s20, 3
    %p52 = por %p50, %p51
    %p53 = scmp.ne.s32.totalorder %s42, %s43
    %p54 = scmp.eq.s32.totalorder %s20, 0
    %p55 = por %p53, %p54
    %p56 = scmp.ne.s32.totalorder %s42, %s43
    %p57 = scmp.eq.s32.totalorder %s21, 3
    %p58 = por %p56, %p57
    %p60 = scmp.ne.s32.totalorder %s43, %s59
    %p61 = scmp.eq.s32.totalorder %s21, 0
    %p62 = por %p60, %p61
    %s63 = smul.u32 %s23, 8
    %s64 = ssub.s32 %s63, 1
    %p65 = scmp.gt.s32.totalorder %s64, 0
    %s66 = scalar_select %p65, %s64, 0
    %s67 = smul.u32 %s30, 8
    %s68 = ssub.s32 %s67, 1
    %p69 = scmp.gt.s32.totalorder %s68, 0
    %s70 = scalar_select %p69, %s68, 0
    %s71 = ssub.s32 %s22, %s34
    %s72 = ssub.s32 %s66, %s70
    %s73 = sor.u32 %s71, %s72
    %p74 = scmp.eq.s32.totalorder %s73, 0
    %s76 = sadd.s32 %s75, 1
    %s77 = scalar_select %p74, %s75, %s76
    %p80 = pneg %p74
    %p81 = scmp.eq.s32.totalorder %s15, 3
    %p82 = por %p80, %p81
    %p83 = scmp.ne.s32.totalorder %s75, %s78
    %p84 = scmp.eq.s32.totalorder %s15, 0
    %p85 = por %p83, %p84
    %p86 = scmp.ne.s32.totalorder %s75, %s78
    %p87 = scmp.eq.s32.totalorder %s20, 3
    %p88 = por %p86, %p87
    %p89 = scmp.ne.s32.totalorder %s78, %s79
    %p90 = scmp.eq.s32.totalorder %s20, 0
    %p91 = por %p89, %p90
    %p92 = scmp.ne.s32.totalorder %s78, %s79
    %p93 = scmp.eq.s32.totalorder %s21, 3
    %p94 = por %p92, %p93
    %p96 = scmp.ne.s32.totalorder %s79, %s95
    %p97 = scmp.eq.s32.totalorder %s21, 0
    %p98 = por %p96, %p97
    %s99 = smul.u32 %s23, 8
    %s100 = sadd.s32 %s99, 8
    %p101 = scmp.lt.s32.totalorder %s100, 15
    %s102 = scalar_select %p101, %s100, 15
    %s103 = smul.u32 %s30, 8
    %s104 = sadd.s32 %s103, 8
    %p105 = scmp.lt.s32.totalorder %s104, 15
    %s106 = scalar_select %p105, %s104, 15
    %s107 = ssub.s32 %s22, %s34
    %s108 = ssub.s32 %s102, %s106
    %s109 = sor.u32 %s107, %s108
    %p110 = scmp.eq.s32.totalorder %s109, 0
    %s112 = sadd.s32 %s111, 1
    %s113 = scalar_select %p110, %s111, %s112
    %p116 = pneg %p110
    %p117 = scmp.eq.s32.totalorder %s15, 3
    %p118 = por %p116, %p117
    %p119 = scmp.ne.s32.totalorder %s111, %s114
    %p120 = scmp.eq.s32.totalorder %s15, 0
    %p121 = por %p119, %p120
    %p122 = scmp.ne.s32.totalorder %s111, %s114
    %p123 = scmp.eq.s32.totalorder %s20, 3
    %p124 = por %p122, %p123
    %p125 = scmp.ne.s32.totalorder %s114, %s115
    %p126 = scmp.eq.s32.totalorder %s20, 0
    %p127 = por %p125, %p126
    %p128 = scmp.ne.s32.totalorder %s114, %s115
    %p129 = scmp.eq.s32.totalorder %s21, 3
    %p130 = por %p128, %p129
    %p132 = scmp.ne.s32.totalorder %s115, %s131
    %p133 = scmp.eq.s32.totalorder %s21, 0
    %p134 = por %p132, %p133
    %s136 = sadd.s32 %s135, 1
    %p139 = scmp.eq.s32.totalorder %s15, 3
    %p140 = scmp.ne.s32.totalorder %s135, %s137
    %p141 = scmp.eq.s32.totalorder %s15, 0
    %p142 = por %p140, %p141
    %p143 = scmp.ne.s32.totalorder %s135, %s137
    %p144 = scmp.eq.s32.totalorder %s20, 3
    %p145 = por %p143, %p144
    %p146 = scmp.ne.s32.totalorder %s137, %s138
    %p147 = scmp.eq.s32.totalorder %s20, 0
    %p148 = por %p146, %p147
    %p149 = scmp.ne.s32.totalorder %s137, %s138
    %p150 = scmp.eq.s32.totalorder %s21, 3
    %p151 = por %p149, %p150
    %p153 = scmp.ne.s32.totalorder %s138, %s152
    %p154 = scmp.eq.s32.totalorder %s21, 0
    %p155 = por %p153, %p154
    %s157 = sadd.s32 %s156, 1
    %p160 = scmp.eq.s32.totalorder %s15, 3
    %p161 = scmp.ne.s32.totalorder %s156, %s158
    %p162 = scmp.eq.s32.totalorder %s15, 0
    %p163 = por %p161, %p162
    %p164 = scmp.ne.s32.totalorder %s156, %s158
    %p165 = scmp.eq.s32.totalorder %s20, 3
    %p166 = por %p164, %p165
    %p167 = scmp.ne.s32.totalorder %s158, %s159
    %p168 = scmp.eq.s32.totalorder %s20, 0
    %p169 = por %p167, %p168
    %p170 = scmp.ne.s32.totalorder %s158, %s159
    %p171 = scmp.eq.s32.totalorder %s21, 3
    %p172 = por %p170, %p171
    %p174 = scmp.ne.s32.totalorder %s159, %s173
    %p175 = scmp.eq.s32.totalorder %s21, 0
    %p176 = por %p174, %p175
    %s178 = sadd.s32 %s177, 1
    %p181 = scmp.eq.s32.totalorder %s15, 3
    %p182 = scmp.ne.s32.totalorder %s177, %s179
    %p183 = scmp.eq.s32.totalorder %s15, 0
    %p184 = por %p182, %p183
    %p185 = scmp.ne.s32.totalorder %s177, %s179
    %p186 = scmp.eq.s32.totalorder %s20, 3
    %p187 = por %p185, %p186
    %p188 = scmp.ne.s32.totalorder %s179, %s180
    %p189 = scmp.eq.s32.totalorder %s20, 0
    %p190 = por %p188, %p189
    %p191 = scmp.ne.s32.totalorder %s179, %s180
    %p192 = scmp.eq.s32.totalorder %s21, 3
    %p193 = por %p191, %p192
    %p195 = scmp.ne.s32.totalorder %s180, %s194
    %p196 = scmp.eq.s32.totalorder %s21, 0
    %p197 = por %p195, %p196
    %s199 = sadd.s32 %s198, 1
    %p202 = scmp.eq.s32.totalorder %s15, 3
    %p203 = scmp.ne.s32.totalorder %s198, %s200
    %p204 = scmp.eq.s32.totalorder %s15, 0
    %p205 = por %p203, %p204
    %p206 = scmp.ne.s32.totalorder %s198, %s200
    %p207 = scmp.eq.s32.totalorder %s20, 3
    %p208 = por %p206, %p207
    %p209 = scmp.ne.s32.totalorder %s200, %s201
    %p210 = scmp.eq.s32.totalorder %s20, 0
    %p211 = por %p209, %p210
    %p212 = scmp.ne.s32.totalorder %s200, %s201
    %p213 = scmp.eq.s32.totalorder %s21, 3
    %p214 = por %p212, %p213
    %p216 = scmp.ne.s32.totalorder %s201, %s215
    %p217 = scmp.eq.s32.totalorder %s21, 0
    %p218 = por %p216, %p217
    %s220 = sadd.s32 %s219, 1
    %p223 = scmp.eq.s32.totalorder %s15, 3
    %p224 = scmp.ne.s32.totalorder %s219, %s221
    %p225 = scmp.eq.s32.totalorder %s15, 0
    %p226 = por %p224, %p225
    %p227 = scmp.ne.s32.totalorder %s219, %s221
    %p228 = scmp.eq.s32.totalorder %s20, 3
    %p229 = por %p227, %p228
    %p230 = scmp.ne.s32.totalorder %s221, %s222
    %p231 = scmp.eq.s32.totalorder %s20, 0
    %p232 = por %p230, %p231
    %p233 = scmp.ne.s32.totalorder %s221, %s222
    %p234 = scmp.eq.s32.totalorder %s21, 3
    %p235 = por %p233, %p234
    %p237 = scmp.ne.s32.totalorder %s222, %s236
    %p238 = scmp.eq.s32.totalorder %s21, 0
    %p239 = por %p237, %p238
    %s241 = sadd.s32 %s240, 1
    %p244 = scmp.eq.s32.totalorder %s15, 3
    %p245 = scmp.ne.s32.totalorder %s240, %s242
    %p246 = scmp.eq.s32.totalorder %s15, 0
    %p247 = por %p245, %p246
    %p248 = scmp.ne.s32.totalorder %s240, %s242
    %p249 = scmp.eq.s32.totalorder %s20, 3
    %p250 = por %p248, %p249
    %p251 = scmp.ne.s32.totalorder %s242, %s243
    %p252 = scmp.eq.s32.totalorder %s20, 0
    %p253 = por %p251, %p252
    %p254 = scmp.ne.s32.totalorder %s242, %s243
    %p255 = scmp.eq.s32.totalorder %s21, 3
    %p256 = por %p254, %p255
    %p258 = scmp.ne.s32.totalorder %s243, %s257
    %p259 = scmp.eq.s32.totalorder %s21, 0
    %p260 = por %p258, %p259
    %s261 = ssub.s32 %s22, %s34
    %s262 = ssub.s32 %s23, %s30
    %s263 = sor.u32 %s261, %s262
    %p264 = scmp.eq.s32.totalorder %s263, 0
    %s266 = sadd.s32 %s265, 1
    %s267 = scalar_select %p264, %s265, %s266
    %p270 = pneg %p264
    %p271 = scmp.eq.s32.totalorder %s15, 3
    %p272 = por %p270, %p271
    %p273 = scmp.ne.s32.totalorder %s265, %s268
    %p274 = scmp.eq.s32.totalorder %s15, 0
    %p275 = por %p273, %p274
    %p276 = scmp.ne.s32.totalorder %s265, %s268
    %p277 = scmp.eq.s32.totalorder %s20, 3
    %p278 = por %p276, %p277
    %p279 = scmp.ne.s32.totalorder %s268, %s269
    %p280 = scmp.eq.s32.totalorder %s20, 0
    %p281 = por %p279, %p280
    %p282 = scmp.ne.s32.totalorder %s268, %s269
    %p283 = scmp.eq.s32.totalorder %s21, 3
    %p284 = por %p282, %p283
    %p286 = scmp.ne.s32.totalorder %s269, %s285
    %p287 = scmp.eq.s32.totalorder %s21, 0
    %p288 = por %p286, %p287
    %p289 = scmp.le.s32.totalorder 1, %s15
    %p290 = scmp.lt.s32.totalorder %s15, 5
    %p291 = pnand %p289, %p290
    %p292 = pneg %p291
    // Predicated region
    $region9: #{tpu_custom_call.1} parent=5 // pred_check
      _
    $region10: #{tpu_custom_call.1} parent=5 // pred_check_branch
      %294 = sbr.rel (%p291) target = $region12
    $region11: #{tpu_custom_call.1} parent=5 // pred_region
      %s295 = ssub.s32 %s15, 1
      // Predicated region
      $region13: #{tpu_custom_call.1} parent=11 // pred_check
        %p296 = pneg %p148
      $region14: #{tpu_custom_call.1} parent=11 // pred_check_branch
        %298 = sbr.rel (%p296) target = $region16
      $region15: #{tpu_custom_call.1} parent=11 // pred_region
        _
      $region16: #{tpu_custom_call.1} parent=11 // pred_fallthru
        _
      // Predicated region
      $region17: #{tpu_custom_call.1} parent=11 // pred_check
        %p299 = pneg %p169
      $region18: #{tpu_custom_call.1} parent=11 // pred_check_branch
        %301 = sbr.rel (%p299) target = $region20
      $region19: #{tpu_custom_call.1} parent=11 // pred_region
        _
      $region20: #{tpu_custom_call.1} parent=11 // pred_fallthru
        _
      // Predicated region
      $region21: #{tpu_custom_call.1} parent=11 // pred_check
        %p302 = pneg %p190
      $region22: #{tpu_custom_call.1} parent=11 // pred_check_branch
        %304 = sbr.rel (%p302) target = $region24
      $region23: #{tpu_custom_call.1} parent=11 // pred_region
        _
      $region24: #{tpu_custom_call.1} parent=11 // pred_fallthru
        _
      // Predicated region
      $region25: #{tpu_custom_call.1} parent=11 // pred_check
        %p305 = pneg %p211
      $region26: #{tpu_custom_call.1} parent=11 // pred_check_branch
        %307 = sbr.rel (%p305) target = $region28
      $region27: #{tpu_custom_call.1} parent=11 // pred_region
        _
      $region28: #{tpu_custom_call.1} parent=11 // pred_fallthru
        _
      // Predicated region
      $region29: #{tpu_custom_call.1} parent=11 // pred_check
        %p308 = pneg %p232
      $region30: #{tpu_custom_call.1} parent=11 // pred_check_branch
        %310 = sbr.rel (%p308) target = $region32
      $region31: #{tpu_custom_call.1} parent=11 // pred_region
        _
      $region32: #{tpu_custom_call.1} parent=11 // pred_fallthru
        _
      // Predicated region
      $region33: #{tpu_custom_call.1} parent=11 // pred_check
        %p311 = pneg %p253
      $region34: #{tpu_custom_call.1} parent=11 // pred_check_branch
        %313 = sbr.rel (%p311) target = $region36
      $region35: #{tpu_custom_call.1} parent=11 // pred_region
        _
      $region36: #{tpu_custom_call.1} parent=11 // pred_fallthru
        _
    $region12: #{tpu_custom_call.1} parent=5 // pred_fallthru
      _
    %p314 = scmp.lt.s32.totalorder %s15, 4
    // Predicated region
    $region37: #{tpu_custom_call.1} parent=5 // pred_check
      %p315 = pneg %p314
    $region38: #{tpu_custom_call.1} parent=5 // pred_check_branch
      %317 = sbr.rel (%p315) target = $region40
    $region39: #{tpu_custom_call.1} parent=5 // pred_region
      // Predicated region
      $region41: #{tpu_custom_call.1} parent=39 // pred_check
        %p318 = pneg %p49
      $region42: #{tpu_custom_call.1} parent=39 // pred_check_branch
        %320 = sbr.rel (%p318) target = $region44
      $region43: #{tpu_custom_call.1} parent=39 // pred_region
        %s321 = smul.u32 16, %s23
        %p322 = scmp.lt.s32.totalorder %s22, 1
        %s323 = scalar_select %p322, %s22, 1
        %p324 = scmp.lt.s32.totalorder %s321, 31
        %s325 = scalar_select %p324, %s321, 31
        %s326 = smul.addr %s323, 32
        %s327 = sadd.s32 %s325, %s326
        %s328 = smul.addr %s327, 8
        %s329 = scalar_lea.vmem %s0, %s328
        %s330 = smul.u32 16, %s23
      $region44: #{tpu_custom_call.1} parent=39 // pred_fallthru
        _
      // Predicated region
      $region45: #{tpu_custom_call.1} parent=39 // pred_check
        %p331 = pneg %p85
      $region46: #{tpu_custom_call.1} parent=39 // pred_check_branch
        %333 = sbr.rel (%p331) target = $region48
      $region47: #{tpu_custom_call.1} parent=39 // pred_region
        %s334 = smul.u32 %s23, 8
        %s335 = ssub.s32 %s334, 1
        %p336 = scmp.gt.s32.totalorder %s335, 0
        %s337 = scalar_select %p336, %s335, 0
        %s338 = smul.u32 2, %s337
        %p339 = scmp.lt.s32.totalorder %s22, 1
        %s340 = scalar_select %p339, %s22, 1
        %p341 = scmp.lt.s32.totalorder %s338, 31
        %s342 = scalar_select %p341, %s338, 31
        %s343 = smul.addr %s340, 32
        %s344 = sadd.s32 %s342, %s343
        %s345 = smul.addr %s344, 8
        %s346 = scalar_lea.vmem %s1, %s345
        %s347 = smul.u32 %s23, 8
        %s348 = ssub.s32 %s347, 1
        %p349 = scmp.gt.s32.totalorder %s348, 0
        %s350 = scalar_select %p349, %s348, 0
        %s351 = smul.u32 2, %s350
      $region48: #{tpu_custom_call.1} parent=39 // pred_fallthru
        _
      // Predicated region
      $region49: #{tpu_custom_call.1} parent=39 // pred_check
        %p352 = pneg %p121
      $region50: #{tpu_custom_call.1} parent=39 // pred_check_branch
        %354 = sbr.rel (%p352) target = $region52
      $region51: #{tpu_custom_call.1} parent=39 // pred_region
        %s355 = smul.u32 %s23, 8
        %s356 = sadd.s32 %s355, 8
        %p357 = scmp.lt.s32.totalorder %s356, 15
        %s358 = scalar_select %p357, %s356, 15
        %s359 = smul.u32 2, %s358
        %p360 = scmp.lt.s32.totalorder %s22, 1
        %s361 = scalar_select %p360, %s22, 1
        %p362 = scmp.lt.s32.totalorder %s359, 31
        %s363 = scalar_select %p362, %s359, 31
        %s364 = smul.addr %s361, 32
        %s365 = sadd.s32 %s363, %s364
        %s366 = smul.addr %s365, 8
        %s367 = scalar_lea.vmem %s2, %s366
        %s368 = smul.u32 %s23, 8
        %s369 = sadd.s32 %s368, 8
        %p370 = scmp.lt.s32.totalorder %s369, 15
        %s371 = scalar_select %p370, %s369, 15
        %s372 = smul.u32 2, %s371
      $region52: #{tpu_custom_call.1} parent=39 // pred_fallthru
        _
    $region40: #{tpu_custom_call.1} parent=5 // pred_fallthru
      _
    %p373 = scmp.le.s32.totalorder 1, %s15
    %p374 = scmp.lt.s32.totalorder %s15, 5
    %p375 = pnand %p373, %p374
    %p376 = pneg %p375
    // Predicated region
    $region53: #{tpu_custom_call.1} parent=5 // pred_check
      _
    $region54: #{tpu_custom_call.1} parent=5 // pred_check_branch
      %378 = sbr.rel (%p375) target = $region56
    $region55: #{tpu_custom_call.1} parent=5 // pred_region
      %s379 = ssub.s32 %s15, 1
      %s380 = smul.u32 16, %s25
      %p381 = scmp.lt.s32.totalorder %s24, 1
      %s382 = scalar_select %p381, %s24, 1
      %p383 = scmp.lt.s32.totalorder %s380, 31
      %s384 = scalar_select %p383, %s380, 31
      %s385 = smul.addr %s382, 32
      %s386 = sadd.s32 %s384, %s385
      %s387 = smul.addr %s386, 8
      %s388 = scalar_lea.vmem %s0, %s387
      %p389 = pneg %p55
      %p390 = pneg %p52
      %s391 = smul.u32 %s25, 8
      %s392 = ssub.s32 %s391, 1
      %p393 = scmp.gt.s32.totalorder %s392, 0
      %s394 = scalar_select %p393, %s392, 0
      %s395 = smul.u32 2, %s394
      %p396 = scmp.lt.s32.totalorder %s24, 1
      %s397 = scalar_select %p396, %s24, 1
      %p398 = scmp.lt.s32.totalorder %s395, 31
      %s399 = scalar_select %p398, %s395, 31
      %s400 = smul.addr %s397, 32
      %s401 = sadd.s32 %s399, %s400
      %s402 = smul.addr %s401, 8
      %s403 = scalar_lea.vmem %s1, %s402
      %p404 = pneg %p91
      %p405 = pneg %p88
      %s406 = smul.u32 %s25, 8
      %s407 = sadd.s32 %s406, 8
      %p408 = scmp.lt.s32.totalorder %s407, 15
      %s409 = scalar_select %p408, %s407, 15
      %s410 = smul.u32 2, %s409
      %p411 = scmp.lt.s32.totalorder %s24, 1
      %s412 = scalar_select %p411, %s24, 1
      %p413 = scmp.lt.s32.totalorder %s410, 31
      %s414 = scalar_select %p413, %s410, 31
      %s415 = smul.addr %s412, 32
      %s416 = sadd.s32 %s414, %s415
      %s417 = smul.addr %s416, 8
      %s418 = scalar_lea.vmem %s2, %s417
      %p419 = pneg %p127
      %p420 = pneg %p124
      %p421 = pneg %p148
      %p422 = pneg %p145
      %p423 = pneg %p169
      %p424 = pneg %p166
      %p425 = pneg %p190
      %p426 = pneg %p187
      %p427 = pneg %p211
      %p428 = pneg %p208
      %p429 = pneg %p232
      %p430 = pneg %p229
      %p431 = pneg %p253
      %p432 = pneg %p250
      %p433 = pneg %p281
      %p434 = pneg %p278
      %s435 = smul.u32 16, %s25
      %p436 = scmp.lt.s32.totalorder %s24, 1
      %s437 = scalar_select %p436, %s24, 1
      %p438 = scmp.lt.s32.totalorder %s435, 31
      %s439 = scalar_select %p438, %s435, 31
      %s440 = smul.addr %s437, 32
      %s441 = sadd.s32 %s439, %s440
      %s442 = smul.addr %s441, 8
      %s443 = scalar_lea.vmem %s9, %s442
      %s444 = smul.u32 16, %s25
      %p445 = scmp.lt.s32.totalorder %s24, 1
      %s446 = scalar_select %p445, %s24, 1
      %p447 = scmp.lt.s32.totalorder %s444, 31
      %s448 = scalar_select %p447, %s444, 31
      %s449 = smul.addr %s446, 32
      %s450 = sadd.s32 %s448, %s449
      %s451 = smul.addr %s450, 8
      %s452 = scalar_lea.vmem %s0, %s451
      %s453 = smul.u32 16, %s25
      %s454 = smul.u32 %s25, 8
      %s455 = ssub.s32 %s454, 1
      %p456 = scmp.gt.s32.totalorder %s455, 0
      %s457 = scalar_select %p456, %s455, 0
      %s458 = smul.u32 2, %s457
      %p459 = scmp.lt.s32.totalorder %s24, 1
      %s460 = scalar_select %p459, %s24, 1
      %p461 = scmp.lt.s32.totalorder %s458, 31
      %s462 = scalar_select %p461, %s458, 31
      %s463 = smul.addr %s460, 32
      %s464 = sadd.s32 %s462, %s463
      %s465 = smul.addr %s464, 8
      %s466 = scalar_lea.vmem %s1, %s465
      %s467 = smul.u32 %s25, 8
      %s468 = ssub.s32 %s467, 1
      %p469 = scmp.gt.s32.totalorder %s468, 0
      %s470 = scalar_select %p469, %s468, 0
      %s471 = smul.u32 2, %s470
      %s472 = smul.u32 %s25, 8
      %s473 = sadd.s32 %s472, 8
      %p474 = scmp.lt.s32.totalorder %s473, 15
      %s475 = scalar_select %p474, %s473, 15
      %s476 = smul.u32 2, %s475
      %p477 = scmp.lt.s32.totalorder %s24, 1
      %s478 = scalar_select %p477, %s24, 1
      %p479 = scmp.lt.s32.totalorder %s476, 31
      %s480 = scalar_select %p479, %s476, 31
      %s481 = smul.addr %s478, 32
      %s482 = sadd.s32 %s480, %s481
      %s483 = smul.addr %s482, 8
      %s484 = scalar_lea.vmem %s2, %s483
      %s485 = smul.u32 %s25, 8
      %s486 = sadd.s32 %s485, 8
      %p487 = scmp.lt.s32.totalorder %s486, 15
      %s488 = scalar_select %p487, %s486, 15
      %s489 = smul.u32 2, %s488
      %s490 = smul.u32 16, %s25
      %p491 = scmp.lt.s32.totalorder %s24, 1
      %s492 = scalar_select %p491, %s24, 1
      %p493 = scmp.lt.s32.totalorder %s490, 31
      %s494 = scalar_select %p493, %s490, 31
      %s495 = smul.addr %s492, 32
      %s496 = sadd.s32 %s494, %s495
      %s497 = smul.addr %s496, 8
      %s498 = scalar_lea.vmem %s9, %s497
      %s499 = smul.u32 16, %s25
      %v501 = vld [vmem:[%s452] sm:$0xff]
      %v502 = vld [vmem:[%s452 + $0x8] sm:$0xff]
      %v503 = vld [vmem:[%s452 + $0x10] sm:$0xff]
      %v504 = vld [vmem:[%s452 + $0x18] sm:$0xff]
      %v505 = vld [vmem:[%s452 + $0x20] sm:$0xff]
      %v506 = vld [vmem:[%s452 + $0x28] sm:$0xff]
      %v507 = vld [vmem:[%s452 + $0x30] sm:$0xff]
      %v508 = vld [vmem:[%s452 + $0x38] sm:$0xff]
      %v509 = vld [vmem:[%s452 + $0x40] sm:$0xff]
      %v510 = vld [vmem:[%s452 + $0x48] sm:$0xff]
      %v511 = vld [vmem:[%s452 + $0x50] sm:$0xff]
      %v512 = vld [vmem:[%s452 + $0x58] sm:$0xff]
      %v513 = vld [vmem:[%s452 + $0x60] sm:$0xff]
      %v514 = vld [vmem:[%s452 + $0x68] sm:$0xff]
      %v515 = vld [vmem:[%s452 + $0x70] sm:$0xff]
      %v516 = vld [vmem:[%s452 + $0x78] sm:$0xff]
      %v517 = vld [vmem:[%s466] sm:$0xff]
      %v518 = vld [vmem:[%s466 + $0x8] sm:$0xff]
      %v519 = vld [vmem:[%s484] sm:$0xff]
      %v520 = vld [vmem:[%s484 + $0x8] sm:$0xff]
      %v521 = vpack.c.bf16 %v518, %v517
      %v522 = vpack.c.bf16 %v502, %v501
      %v523 = vpack.c.bf16 %v504, %v503
      %v524 = vpack.c.bf16 %v506, %v505
      %v525 = vpack.c.bf16 %v508, %v507
      %v526 = vpack.c.bf16 %v510, %v509
      %v527 = vpack.c.bf16 %v512, %v511
      %v528 = vpack.c.bf16 %v514, %v513
      %v529 = vpack.c.bf16 %v516, %v515
      %v530 = vpack.c.bf16 %v520, %v519
      %v531 = vld [vmem:[%s3] sm:$0xf]
      %v532 = vld [vmem:[%s3 + $0x4] sm:$0xf]
      %v533 = vld [vmem:[%s6] sm:$0x1]
      %v535 = vlaneseq
      %v536 = vshrl.u32 %v535, 7
      %v537 = vsub.s32 0, %v536
      %v538 = vrot.slane %v533, %v537
      %v542 = vunpack.c.l.b16 %v531
      %v543 = vunpack.c.l.b16 %v532
      %v544 = vpack.c.b16 %v543, %v542
      %vm546 = vcmask 130048
      %v548 = vsel %vm546, %v521, 0
      %v551 = vsel %vm546, %v522, 0
      %v554 = vsel %vm546, %v523, 0
      %v557 = vsel %vm546, %v524, 0
      %v560 = vsel %vm546, %v525, 0
      %v563 = vsel %vm546, %v526, 0
      %v566 = vsel %vm546, %v527, 0
      %v569 = vsel %vm546, %v528, 0
      %v572 = vsel %vm546, %v529, 0
      %v575 = vsel %vm546, %v530, 0
      %577 = vmatprep.subr.bf16.mxu0 0
      %578 = vmatpush1.bf16.msra.mxu0 0
      %579 = vmatprep.subr.bf16.mxu0 0
      %580 = vmatpush1.bf16.msra.mxu0 0
      %581 = vmatprep.subr.bf16.mxu0 0
      %582 = vmatpush1.bf16.msra.mxu0 0
      %583 = vmatprep.subr.bf16.mxu0 0
      %584 = vmatpush1.bf16.msra.mxu0 0
      %585 = vmatprep.subr.bf16.mxu0 0
      %586 = vmatpush1.bf16.msra.mxu0 0
      %587 = vmatprep.subr.bf16.mxu0 0
      %588 = vmatpush1.bf16.msra.mxu0 0
      %589 = vmatprep.subr.bf16.mxu0 0
      %590 = vmatpush1.bf16.msra.mxu0 0
      %591 = vmatprep.subr.bf16.mxu0 0
      %592 = vmatpush1.bf16.msra.mxu0 %v544
      %593 = vmatprep.subr.bf16.mxu0 0
      %594 = vmatpush2.bf16.msra.mxu0 0
      %595 = vmatprep.subr.bf16.mxu0 0
      %596 = vmatpush2.bf16.msra.mxu0 0
      %597 = vmatprep.subr.bf16.mxu0 0
      %598 = vmatpush2.bf16.msra.mxu0 0
      %599 = vmatprep.subr.bf16.mxu0 0
      %600 = vmatpush2.bf16.msra.mxu0 0
      %601 = vmatprep.subr.bf16.mxu0 0
      %602 = vmatpush2.bf16.msra.mxu0 0
      %603 = vmatprep.subr.bf16.mxu0 0
      %604 = vmatpush2.bf16.msra.mxu0 0
      %605 = vmatprep.subr.bf16.mxu0 0
      %606 = vmatpush2.bf16.msra.mxu0 0
      %607 = vmatprep.subr.bf16.mxu0 0
      %608 = vmatpush2.bf16.msra.mxu0 0
      %609 = vmatprep.mubr.bf16.mxu0 0
      %610 = vmatmul.mubr.bf16.gmra.mxu0 %v548
      %v611 = vpop.f32.mrf.mxu0
      %v612 = vadd.f32 %v538, %v611
      %v613 = vpop.f32.mrf.mxu0
      %v614 = vpop.f32.mrf.mxu0
      %v615 = vadd.f32 %v538, %v614
      %v616 = vpop.f32.mrf.mxu0
      %617 = vmatprep.mubr.bf16.mxu0 0
      %618 = vmatmul.mubr.bf16.gmra.mxu0 %v551
      %v619 = vpop.f32.mrf.mxu0
      %v620 = vadd.f32 %v538, %v619
      %v621 = vpop.f32.mrf.mxu0
      %v622 = vpop.f32.mrf.mxu0
      %v623 = vadd.f32 %v538, %v622
      %v624 = vpop.f32.mrf.mxu0
      %625 = vmatprep.mubr.bf16.mxu0 0
      %626 = vmatmul.mubr.bf16.gmra.mxu0 %v554
      %v627 = vpop.f32.mrf.mxu0
      %v628 = vadd.f32 %v538, %v627
      %v629 = vpop.f32.mrf.mxu0
      %v630 = vpop.f32.mrf.mxu0
      %v631 = vadd.f32 %v538, %v630
      %v632 = vpop.f32.mrf.mxu0
      %633 = vmatprep.mubr.bf16.mxu0 0
      %634 = vmatmul.mubr.bf16.gmra.mxu0 %v557
      %v635 = vpop.f32.mrf.mxu0
      %v636 = vadd.f32 %v538, %v635
      %v637 = vpop.f32.mrf.mxu0
      %v638 = vpop.f32.mrf.mxu0
      %v639 = vadd.f32 %v538, %v638
      %v640 = vpop.f32.mrf.mxu0
      %641 = vmatprep.mubr.bf16.mxu0 0
      %642 = vmatmul.mubr.bf16.gmra.mxu0 %v560
      %v643 = vpop.f32.mrf.mxu0
      %v644 = vadd.f32 %v538, %v643
      %v645 = vpop.f32.mrf.mxu0
      %v646 = vpop.f32.mrf.mxu0
      %v647 = vadd.f32 %v538, %v646
      %v648 = vpop.f32.mrf.mxu0
      %649 = vmatprep.mubr.bf16.mxu0 0
      %650 = vmatmul.mubr.bf16.gmra.mxu0 %v563
      %v651 = vpop.f32.mrf.mxu0
      %v652 = vadd.f32 %v538, %v651
      %v653 = vpop.f32.mrf.mxu0
      %v654 = vpop.f32.mrf.mxu0
      %v655 = vadd.f32 %v538, %v654
      %v656 = vpop.f32.mrf.mxu0
      %657 = vmatprep.mubr.bf16.mxu0 0
      %658 = vmatmul.mubr.bf16.gmra.mxu0 %v566
      %v659 = vpop.f32.mrf.mxu0
      %v660 = vadd.f32 %v538, %v659
      %v661 = vpop.f32.mrf.mxu0
      %v662 = vpop.f32.mrf.mxu0
      %v663 = vadd.f32 %v538, %v662
      %v664 = vpop.f32.mrf.mxu0
      %665 = vmatprep.mubr.bf16.mxu0 0
      %666 = vmatmul.mubr.bf16.gmra.mxu0 %v569
      %v667 = vpop.f32.mrf.mxu0
      %v668 = vadd.f32 %v538, %v667
      %v669 = vpop.f32.mrf.mxu0
      %v670 = vpop.f32.mrf.mxu0
      %v671 = vadd.f32 %v538, %v670
      %v672 = vpop.f32.mrf.mxu0
      %673 = vmatprep.mubr.bf16.mxu0 0
      %674 = vmatmul.mubr.bf16.gmra.mxu0 %v572
      %v675 = vpop.f32.mrf.mxu0
      %v676 = vadd.f32 %v538, %v675
      %v677 = vpop.f32.mrf.mxu0
      %v678 = vpop.f32.mrf.mxu0
      %v679 = vadd.f32 %v538, %v678
      %v680 = vpop.f32.mrf.mxu0
      %681 = vmatprep.mubr.bf16.mxu0 0
      %682 = vmatmul.mubr.bf16.gmra.mxu0 %v575
      %v683 = vpop.f32.mrf.mxu0
      %v684 = vadd.f32 %v538, %v683
      %v685 = vpop.f32.mrf.mxu0
      %v686 = vpop.f32.mrf.mxu0
      %v687 = vadd.f32 %v538, %v686
      %v688 = vpop.f32.mrf.mxu0
      %689 = vdwg.mxu0
      %v690 = vmax.f32 %v612, 0.0
      %v691 = vmax.f32 %v615, 0.0
      %v692 = vmax.f32 %v620, 0.0
      %v693 = vmax.f32 %v623, 0.0
      %v694 = vmax.f32 %v628, 0.0
      %v695 = vmax.f32 %v631, 0.0
      %v696 = vmax.f32 %v636, 0.0
      %v697 = vmax.f32 %v639, 0.0
      %v698 = vmax.f32 %v644, 0.0
      %v699 = vmax.f32 %v647, 0.0
      %v700 = vmax.f32 %v652, 0.0
      %v701 = vmax.f32 %v655, 0.0
      %v702 = vmax.f32 %v660, 0.0
      %v703 = vmax.f32 %v663, 0.0
      %v704 = vmax.f32 %v668, 0.0
      %v705 = vmax.f32 %v671, 0.0
      %v706 = vmax.f32 %v676, 0.0
      %v707 = vmax.f32 %v679, 0.0
      %v708 = vmax.f32 %v684, 0.0
      %v709 = vmax.f32 %v687, 0.0
      %v710 = vlaneseq
      %v711 = vshrl.u32 %v710, 7
      %v712 = vadd.s32 %v711, 8
      %v713 = vadd.s32 %v711, 16
      %v714 = vadd.s32 %v711, 24
      %v715 = vadd.s32 %v711, 32
      %v716 = vadd.s32 %v711, 40
      %v717 = vadd.s32 %v711, 48
      %v718 = vadd.s32 %v711, 56
      %v719 = vadd.s32 %v711, 64
      %v720 = vadd.s32 %v711, 72
      %v721 = vadd.s32 %v711, 80
      %v722 = vadd.s32 %v711, 88
      %v723 = vadd.s32 %v711, 96
      %v724 = vadd.s32 %v711, 104
      %v725 = vadd.s32 %v711, 112
      %v726 = vadd.s32 %v711, 120
      %v727 = vadd.s32 %v711, 128
      %v728 = vadd.s32 %v711, 136
      %v729 = vadd.s32 %v711, 144
      %v730 = vadd.s32 %v711, 152
      %vm731 = vcmp.ge.s32.totalorder %v711, 16
      %vm732 = vcmp.ge.s32.totalorder %v712, 16
      %vm733 = vcmp.ge.s32.totalorder %v713, 16
      %vm734 = vcmp.ge.s32.totalorder %v714, 16
      %vm735 = vcmp.ge.s32.totalorder %v715, 16
      %vm736 = vcmp.ge.s32.totalorder %v716, 16
      %vm737 = vcmp.ge.s32.totalorder %v717, 16
      %vm738 = vcmp.ge.s32.totalorder %v718, 16
      %vm739 = vcmp.ge.s32.totalorder %v719, 16
      %vm740 = vcmp.ge.s32.totalorder %v720, 16
      %vm741 = vcmp.ge.s32.totalorder %v721, 16
      %vm742 = vcmp.ge.s32.totalorder %v722, 16
      %vm743 = vcmp.ge.s32.totalorder %v723, 16
      %vm744 = vcmp.ge.s32.totalorder %v724, 16
      %vm745 = vcmp.ge.s32.totalorder %v725, 16
      %vm746 = vcmp.ge.s32.totalorder %v726, 16
      %vm747 = vcmp.ge.s32.totalorder %v727, 16
      %vm748 = vcmp.ge.s32.totalorder %v728, 16
      %vm749 = vcmp.ge.s32.totalorder %v729, 16
      %vm750 = vcmp.ge.s32.totalorder %v730, 16
      %p751 = scmp.ne.s32.totalorder %s25, 0
      %s752 = scalar_select %p751, 1, 0
      %v753 = vstv %s752
      %vm754 = vcmp.eq.s32.totalorder %v753, 1
      %vm755 = vmor %vm731, %vm754
      %vm756 = vmor %vm732, %vm754
      %vm757 = vmor %vm733, %vm754
      %vm758 = vmor %vm734, %vm754
      %vm759 = vmor %vm735, %vm754
      %vm760 = vmor %vm736, %vm754
      %vm761 = vmor %vm737, %vm754
      %vm762 = vmor %vm738, %vm754
      %vm763 = vmor %vm739, %vm754
      %vm764 = vmor %vm740, %vm754
      %vm765 = vmor %vm741, %vm754
      %vm766 = vmor %vm742, %vm754
      %vm767 = vmor %vm743, %vm754
      %vm768 = vmor %vm744, %vm754
      %vm769 = vmor %vm745, %vm754
      %vm770 = vmor %vm746, %vm754
      %vm771 = vmor %vm747, %vm754
      %vm772 = vmor %vm748, %vm754
      %vm773 = vmor %vm749, %vm754
      %vm774 = vmor %vm750, %vm754
      %vm775 = vcmp.lt.s32.totalorder %v711, 144
      %vm776 = vcmp.lt.s32.totalorder %v712, 144
      %vm777 = vcmp.lt.s32.totalorder %v713, 144
      %vm778 = vcmp.lt.s32.totalorder %v714, 144
      %vm779 = vcmp.lt.s32.totalorder %v715, 144
      %vm780 = vcmp.lt.s32.totalorder %v716, 144
      %vm781 = vcmp.lt.s32.totalorder %v717, 144
      %vm782 = vcmp.lt.s32.totalorder %v718, 144
      %vm783 = vcmp.lt.s32.totalorder %v719, 144
      %vm784 = vcmp.lt.s32.totalorder %v720, 144
      %vm785 = vcmp.lt.s32.totalorder %v721, 144
      %vm786 = vcmp.lt.s32.totalorder %v722, 144
      %vm787 = vcmp.lt.s32.totalorder %v723, 144
      %vm788 = vcmp.lt.s32.totalorder %v724, 144
      %vm789 = vcmp.lt.s32.totalorder %v725, 144
      %vm790 = vcmp.lt.s32.totalorder %v726, 144
      %vm791 = vcmp.lt.s32.totalorder %v727, 144
      %vm792 = vcmp.lt.s32.totalorder %v728, 144
      %vm793 = vcmp.lt.s32.totalorder %v729, 144
      %vm794 = vcmp.lt.s32.totalorder %v730, 144
      %p795 = scmp.ne.s32.totalorder %s25, 1
      %s796 = scalar_select %p795, 1, 0
      %v797 = vstv %s796
      %vm798 = vcmp.eq.s32.totalorder %v797, 1
      %vm799 = vmor %vm775, %vm798
      %vm800 = vmor %vm776, %vm798
      %vm801 = vmor %vm777, %vm798
      %vm802 = vmor %vm778, %vm798
      %vm803 = vmor %vm779, %vm798
      %vm804 = vmor %vm780, %vm798
      %vm805 = vmor %vm781, %vm798
      %vm806 = vmor %vm782, %vm798
      %vm807 = vmor %vm783, %vm798
      %vm808 = vmor %vm784, %vm798
      %vm809 = vmor %vm785, %vm798
      %vm810 = vmor %vm786, %vm798
      %vm811 = vmor %vm787, %vm798
      %vm812 = vmor %vm788, %vm798
      %vm813 = vmor %vm789, %vm798
      %vm814 = vmor %vm790, %vm798
      %vm815 = vmor %vm791, %vm798
      %vm816 = vmor %vm792, %vm798
      %vm817 = vmor %vm793, %vm798
      %vm818 = vmor %vm794, %vm798
      %vm819 = vmand %vm755, %vm799
      %vm820 = vmand %vm756, %vm800
      %vm821 = vmand %vm757, %vm801
      %vm822 = vmand %vm758, %vm802
      %vm823 = vmand %vm759, %vm803
      %vm824 = vmand %vm760, %vm804
      %vm825 = vmand %vm761, %vm805
      %vm826 = vmand %vm762, %vm806
      %vm827 = vmand %vm763, %vm807
      %vm828 = vmand %vm764, %vm808
      %vm829 = vmand %vm765, %vm809
      %vm830 = vmand %vm766, %vm810
      %vm831 = vmand %vm767, %vm811
      %vm832 = vmand %vm768, %vm812
      %vm833 = vmand %vm769, %vm813
      %vm834 = vmand %vm770, %vm814
      %vm835 = vmand %vm771, %vm815
      %vm836 = vmand %vm772, %vm816
      %vm837 = vmand %vm773, %vm817
      %vm838 = vmand %vm774, %vm818
      %v839 = vsel %vm819, 1, 0
      %v840 = vsel %vm820, 1, 0
      %v841 = vsel %vm821, 1, 0
      %v842 = vsel %vm822, 1, 0
      %v843 = vsel %vm823, 1, 0
      %v844 = vsel %vm824, 1, 0
      %v845 = vsel %vm825, 1, 0
      %v846 = vsel %vm826, 1, 0
      %v847 = vsel %vm827, 1, 0
      %v848 = vsel %vm828, 1, 0
      %v849 = vsel %vm829, 1, 0
      %v850 = vsel %vm830, 1, 0
      %v851 = vsel %vm831, 1, 0
      %v852 = vsel %vm832, 1, 0
      %v853 = vsel %vm833, 1, 0
      %v854 = vsel %vm834, 1, 0
      %v855 = vsel %vm835, 1, 0
      %v856 = vsel %vm836, 1, 0
      %v857 = vsel %vm837, 1, 0
      %v858 = vsel %vm838, 1, 0
      %vm859 = vcmp.eq.s32.totalorder %v839, 1
      %vm860 = vcmp.eq.s32.totalorder %v840, 1
      %vm861 = vcmp.eq.s32.totalorder %v841, 1
      %vm862 = vcmp.eq.s32.totalorder %v842, 1
      %vm863 = vcmp.eq.s32.totalorder %v843, 1
      %vm864 = vcmp.eq.s32.totalorder %v844, 1
      %vm865 = vcmp.eq.s32.totalorder %v845, 1
      %vm866 = vcmp.eq.s32.totalorder %v846, 1
      %vm867 = vcmp.eq.s32.totalorder %v847, 1
      %vm868 = vcmp.eq.s32.totalorder %v848, 1
      %vm869 = vcmp.eq.s32.totalorder %v849, 1
      %vm870 = vcmp.eq.s32.totalorder %v850, 1
      %vm871 = vcmp.eq.s32.totalorder %v851, 1
      %vm872 = vcmp.eq.s32.totalorder %v852, 1
      %vm873 = vcmp.eq.s32.totalorder %v853, 1
      %vm874 = vcmp.eq.s32.totalorder %v854, 1
      %vm875 = vcmp.eq.s32.totalorder %v855, 1
      %vm876 = vcmp.eq.s32.totalorder %v856, 1
      %vm877 = vcmp.eq.s32.totalorder %v857, 1
      %vm878 = vcmp.eq.s32.totalorder %v858, 1
      %v879 = vsel %vm859, %v690, 0.0
      %v880 = vsel %vm860, %v691, 0.0
      %v881 = vsel %vm861, %v692, 0.0
      %v882 = vsel %vm862, %v693, 0.0
      %v883 = vsel %vm863, %v694, 0.0
      %v884 = vsel %vm864, %v695, 0.0
      %v885 = vsel %vm865, %v696, 0.0
      %v886 = vsel %vm866, %v697, 0.0
      %v887 = vsel %vm867, %v698, 0.0
      %v888 = vsel %vm868, %v699, 0.0
      %v889 = vsel %vm869, %v700, 0.0
      %v890 = vsel %vm870, %v701, 0.0
      %v891 = vsel %vm871, %v702, 0.0
      %v892 = vsel %vm872, %v703, 0.0
      %v893 = vsel %vm873, %v704, 0.0
      %v894 = vsel %vm874, %v705, 0.0
      %v895 = vsel %vm875, %v706, 0.0
      %v896 = vsel %vm876, %v707, 0.0
      %v897 = vsel %vm877, %v708, 0.0
      %v898 = vsel %vm878, %v709, 0.0
      %vm899 = vcmp.lt.s32.totalorder %v711, 0
      %v900 = vsub.s32 0, %v711
      %v901 = vsel %vm899, %v900, %v711
      %v902 = vshrl.u32 %v901, 4
      %v903 = vand.u32 %v901, 15
      %v904 = vsub.s32 0, %v903
      %v905 = vsel %vm899, %v904, %v903
      %vm906 = vcmp.lt.s32.totalorder %v712, 0
      %v907 = vsub.s32 0, %v712
      %v908 = vsel %vm906, %v907, %v712
      %v909 = vshrl.u32 %v908, 4
      %v910 = vand.u32 %v908, 15
      %v911 = vsub.s32 0, %v910
      %v912 = vsel %vm906, %v911, %v910
      %vm913 = vcmp.lt.s32.totalorder %v713, 0
      %v914 = vsub.s32 0, %v713
      %v915 = vsel %vm913, %v914, %v713
      %v916 = vshrl.u32 %v915, 4
      %v917 = vand.u32 %v915, 15
      %v918 = vsub.s32 0, %v917
      %v919 = vsel %vm913, %v918, %v917
      %vm920 = vcmp.lt.s32.totalorder %v714, 0
      %v921 = vsub.s32 0, %v714
      %v922 = vsel %vm920, %v921, %v714
      %v923 = vshrl.u32 %v922, 4
      %v924 = vand.u32 %v922, 15
      %v925 = vsub.s32 0, %v924
      %v926 = vsel %vm920, %v925, %v924
      %vm927 = vcmp.lt.s32.totalorder %v715, 0
      %v928 = vsub.s32 0, %v715
      %v929 = vsel %vm927, %v928, %v715
      %v930 = vshrl.u32 %v929, 4
      %v931 = vand.u32 %v929, 15
      %v932 = vsub.s32 0, %v931
      %v933 = vsel %vm927, %v932, %v931
      %vm934 = vcmp.lt.s32.totalorder %v716, 0
      %v935 = vsub.s32 0, %v716
      %v936 = vsel %vm934, %v935, %v716
      %v937 = vshrl.u32 %v936, 4
      %v938 = vand.u32 %v936, 15
      %v939 = vsub.s32 0, %v938
      %v940 = vsel %vm934, %v939, %v938
      %vm941 = vcmp.lt.s32.totalorder %v717, 0
      %v942 = vsub.s32 0, %v717
      %v943 = vsel %vm941, %v942, %v717
      %v944 = vshrl.u32 %v943, 4
      %v945 = vand.u32 %v943, 15
      %v946 = vsub.s32 0, %v945
      %v947 = vsel %vm941, %v946, %v945
      %vm948 = vcmp.lt.s32.totalorder %v718, 0
      %v949 = vsub.s32 0, %v718
      %v950 = vsel %vm948, %v949, %v718
      %v951 = vshrl.u32 %v950, 4
      %v952 = vand.u32 %v950, 15
      %v953 = vsub.s32 0, %v952
      %v954 = vsel %vm948, %v953, %v952
      %vm955 = vcmp.lt.s32.totalorder %v719, 0
      %v956 = vsub.s32 0, %v719
      %v957 = vsel %vm955, %v956, %v719
      %v958 = vshrl.u32 %v957, 4
      %v959 = vand.u32 %v957, 15
      %v960 = vsub.s32 0, %v959
      %v961 = vsel %vm955, %v960, %v959
      %vm962 = vcmp.lt.s32.totalorder %v720, 0
      %v963 = vsub.s32 0, %v720
      %v964 = vsel %vm962, %v963, %v720
      %v965 = vshrl.u32 %v964, 4
      %v966 = vand.u32 %v964, 15
      %v967 = vsub.s32 0, %v966
      %v968 = vsel %vm962, %v967, %v966
      %vm969 = vcmp.lt.s32.totalorder %v721, 0
      %v970 = vsub.s32 0, %v721
      %v971 = vsel %vm969, %v970, %v721
      %v972 = vshrl.u32 %v971, 4
      %v973 = vand.u32 %v971, 15
      %v974 = vsub.s32 0, %v973
      %v975 = vsel %vm969, %v974, %v973
      %vm976 = vcmp.lt.s32.totalorder %v722, 0
      %v977 = vsub.s32 0, %v722
      %v978 = vsel %vm976, %v977, %v722
      %v979 = vshrl.u32 %v978, 4
      %v980 = vand.u32 %v978, 15
      %v981 = vsub.s32 0, %v980
      %v982 = vsel %vm976, %v981, %v980
      %vm983 = vcmp.lt.s32.totalorder %v723, 0
      %v984 = vsub.s32 0, %v723
      %v985 = vsel %vm983, %v984, %v723
      %v986 = vshrl.u32 %v985, 4
      %v987 = vand.u32 %v985, 15
      %v988 = vsub.s32 0, %v987
      %v989 = vsel %vm983, %v988, %v987
      %vm990 = vcmp.lt.s32.totalorder %v724, 0
      %v991 = vsub.s32 0, %v724
      %v992 = vsel %vm990, %v991, %v724
      %v993 = vshrl.u32 %v992, 4
      %v994 = vand.u32 %v992, 15
      %v995 = vsub.s32 0, %v994
      %v996 = vsel %vm990, %v995, %v994
      %vm997 = vcmp.lt.s32.totalorder %v725, 0
      %v998 = vsub.s32 0, %v725
      %v999 = vsel %vm997, %v998, %v725
      %v1000 = vshrl.u32 %v999, 4
      %v1001 = vand.u32 %v999, 15
      %v1002 = vsub.s32 0, %v1001
      %v1003 = vsel %vm997, %v1002, %v1001
      %vm1004 = vcmp.lt.s32.totalorder %v726, 0
      %v1005 = vsub.s32 0, %v726
      %v1006 = vsel %vm1004, %v1005, %v726
      %v1007 = vshrl.u32 %v1006, 4
      %v1008 = vand.u32 %v1006, 15
      %v1009 = vsub.s32 0, %v1008
      %v1010 = vsel %vm1004, %v1009, %v1008
      %vm1011 = vcmp.lt.s32.totalorder %v727, 0
      %v1012 = vsub.s32 0, %v727
      %v1013 = vsel %vm1011, %v1012, %v727
      %v1014 = vshrl.u32 %v1013, 4
      %v1015 = vand.u32 %v1013, 15
      %v1016 = vsub.s32 0, %v1015
      %v1017 = vsel %vm1011, %v1016, %v1015
      %vm1018 = vcmp.lt.s32.totalorder %v728, 0
      %v1019 = vsub.s32 0, %v728
      %v1020 = vsel %vm1018, %v1019, %v728
      %v1021 = vshrl.u32 %v1020, 4
      %v1022 = vand.u32 %v1020, 15
      %v1023 = vsub.s32 0, %v1022
      %v1024 = vsel %vm1018, %v1023, %v1022
      %vm1025 = vcmp.lt.s32.totalorder %v729, 0
      %v1026 = vsub.s32 0, %v729
      %v1027 = vsel %vm1025, %v1026, %v729
      %v1028 = vshrl.u32 %v1027, 4
      %v1029 = vand.u32 %v1027, 15
      %v1030 = vsub.s32 0, %v1029
      %v1031 = vsel %vm1025, %v1030, %v1029
      %vm1032 = vcmp.lt.s32.totalorder %v730, 0
      %v1033 = vsub.s32 0, %v730
      %v1034 = vsel %vm1032, %v1033, %v730
      %v1035 = vshrl.u32 %v1034, 4
      %v1036 = vand.u32 %v1034, 15
      %v1037 = vsub.s32 0, %v1036
      %v1038 = vsel %vm1032, %v1037, %v1036
      %vm1039 = vcmp.ne.s32.totalorder %v905, 0
      %vm1040 = vcmp.ne.s32.totalorder %v912, 0
      %vm1041 = vcmp.ne.s32.totalorder %v919, 0
      %vm1042 = vcmp.ne.s32.totalorder %v926, 0
      %vm1043 = vcmp.ne.s32.totalorder %v933, 0
      %vm1044 = vcmp.ne.s32.totalorder %v940, 0
      %vm1045 = vcmp.ne.s32.totalorder %v947, 0
      %vm1046 = vcmp.ne.s32.totalorder %v954, 0
      %vm1047 = vcmp.ne.s32.totalorder %v961, 0
      %vm1048 = vcmp.ne.s32.totalorder %v968, 0
      %vm1049 = vcmp.ne.s32.totalorder %v975, 0
      %vm1050 = vcmp.ne.s32.totalorder %v982, 0
      %vm1051 = vcmp.ne.s32.totalorder %v989, 0
      %vm1052 = vcmp.ne.s32.totalorder %v996, 0
      %vm1053 = vcmp.ne.s32.totalorder %v1003, 0
      %vm1054 = vcmp.ne.s32.totalorder %v1010, 0
      %vm1055 = vcmp.ne.s32.totalorder %v1017, 0
      %vm1056 = vcmp.ne.s32.totalorder %v1024, 0
      %vm1057 = vcmp.ne.s32.totalorder %v1031, 0
      %vm1058 = vcmp.ne.s32.totalorder %v1038, 0
      %vm1059 = vcmp.lt.s32.totalorder %v905, 0
      %vm1060 = vcmp.lt.s32.totalorder %v912, 0
      %vm1061 = vcmp.lt.s32.totalorder %v919, 0
      %vm1062 = vcmp.lt.s32.totalorder %v926, 0
      %vm1063 = vcmp.lt.s32.totalorder %v933, 0
      %vm1064 = vcmp.lt.s32.totalorder %v940, 0
      %vm1065 = vcmp.lt.s32.totalorder %v947, 0
      %vm1066 = vcmp.lt.s32.totalorder %v954, 0
      %vm1067 = vcmp.lt.s32.totalorder %v961, 0
      %vm1068 = vcmp.lt.s32.totalorder %v968, 0
      %vm1069 = vcmp.lt.s32.totalorder %v975, 0
      %vm1070 = vcmp.lt.s32.totalorder %v982, 0
      %vm1071 = vcmp.lt.s32.totalorder %v989, 0
      %vm1072 = vcmp.lt.s32.totalorder %v996, 0
      %vm1073 = vcmp.lt.s32.totalorder %v1003, 0
      %vm1074 = vcmp.lt.s32.totalorder %v1010, 0
      %vm1075 = vcmp.lt.s32.totalorder %v1017, 0
      %vm1076 = vcmp.lt.s32.totalorder %v1024, 0
      %vm1077 = vcmp.lt.s32.totalorder %v1031, 0
      %vm1078 = vcmp.lt.s32.totalorder %v1038, 0
      %vm1079 = vmand %vm1059, %vm1039
      %vm1080 = vmand %vm1060, %vm1040
      %vm1081 = vmand %vm1061, %vm1041
      %vm1082 = vmand %vm1062, %vm1042
      %vm1083 = vmand %vm1063, %vm1043
      %vm1084 = vmand %vm1064, %vm1044
      %vm1085 = vmand %vm1065, %vm1045
      %vm1086 = vmand %vm1066, %vm1046
      %vm1087 = vmand %vm1067, %vm1047
      %vm1088 = vmand %vm1068, %vm1048
      %vm1089 = vmand %vm1069, %vm1049
      %vm1090 = vmand %vm1070, %vm1050
      %vm1091 = vmand %vm1071, %vm1051
      %vm1092 = vmand %vm1072, %vm1052
      %vm1093 = vmand %vm1073, %vm1053
      %vm1094 = vmand %vm1074, %vm1054
      %vm1095 = vmand %vm1075, %vm1055
      %vm1096 = vmand %vm1076, %vm1056
      %vm1097 = vmand %vm1077, %vm1057
      %vm1098 = vmand %vm1078, %vm1058
      %v1099 = vadd.s32 %v905, 16
      %v1100 = vadd.s32 %v912, 16
      %v1101 = vadd.s32 %v919, 16
      %v1102 = vadd.s32 %v926, 16
      %v1103 = vadd.s32 %v933, 16
      %v1104 = vadd.s32 %v940, 16
      %v1105 = vadd.s32 %v947, 16
      %v1106 = vadd.s32 %v954, 16
      %v1107 = vadd.s32 %v961, 16
      %v1108 = vadd.s32 %v968, 16
      %v1109 = vadd.s32 %v975, 16
      %v1110 = vadd.s32 %v982, 16
      %v1111 = vadd.s32 %v989, 16
      %v1112 = vadd.s32 %v996, 16
      %v1113 = vadd.s32 %v1003, 16
      %v1114 = vadd.s32 %v1010, 16
      %v1115 = vadd.s32 %v1017, 16
      %v1116 = vadd.s32 %v1024, 16
      %v1117 = vadd.s32 %v1031, 16
      %v1118 = vadd.s32 %v1038, 16
      %v1119 = vsel %vm1079, %v1099, %v905
      %v1120 = vsel %vm1080, %v1100, %v912
      %v1121 = vsel %vm1081, %v1101, %v919
      %v1122 = vsel %vm1082, %v1102, %v926
      %v1123 = vsel %vm1083, %v1103, %v933
      %v1124 = vsel %vm1084, %v1104, %v940
      %v1125 = vsel %vm1085, %v1105, %v947
      %v1126 = vsel %vm1086, %v1106, %v954
      %v1127 = vsel %vm1087, %v1107, %v961
      %v1128 = vsel %vm1088, %v1108, %v968
      %v1129 = vsel %vm1089, %v1109, %v975
      %v1130 = vsel %vm1090, %v1110, %v982
      %v1131 = vsel %vm1091, %v1111, %v989
      %v1132 = vsel %vm1092, %v1112, %v996
      %v1133 = vsel %vm1093, %v1113, %v1003
      %v1134 = vsel %vm1094, %v1114, %v1010
      %v1135 = vsel %vm1095, %v1115, %v1017
      %v1136 = vsel %vm1096, %v1116, %v1024
      %v1137 = vsel %vm1097, %v1117, %v1031
      %v1138 = vsel %vm1098, %v1118, %v1038
      %vm1139 = vcmp.ne.s32.totalorder %v1119, 0
      %vm1140 = vcmp.ne.s32.totalorder %v1120, 0
      %vm1141 = vcmp.ne.s32.totalorder %v1121, 0
      %vm1142 = vcmp.ne.s32.totalorder %v1122, 0
      %vm1143 = vcmp.ne.s32.totalorder %v1123, 0
      %vm1144 = vcmp.ne.s32.totalorder %v1124, 0
      %vm1145 = vcmp.ne.s32.totalorder %v1125, 0
      %vm1146 = vcmp.ne.s32.totalorder %v1126, 0
      %vm1147 = vcmp.ne.s32.totalorder %v1127, 0
      %vm1148 = vcmp.ne.s32.totalorder %v1128, 0
      %vm1149 = vcmp.ne.s32.totalorder %v1129, 0
      %vm1150 = vcmp.ne.s32.totalorder %v1130, 0
      %vm1151 = vcmp.ne.s32.totalorder %v1131, 0
      %vm1152 = vcmp.ne.s32.totalorder %v1132, 0
      %vm1153 = vcmp.ne.s32.totalorder %v1133, 0
      %vm1154 = vcmp.ne.s32.totalorder %v1134, 0
      %vm1155 = vcmp.ne.s32.totalorder %v1135, 0
      %vm1156 = vcmp.ne.s32.totalorder %v1136, 0
      %vm1157 = vcmp.ne.s32.totalorder %v1137, 0
      %vm1158 = vcmp.ne.s32.totalorder %v1138, 0
      %v1159 = vrot.slane %v879, 7
      %v1160 = vrot.slane %v880, 7
      %v1161 = vrot.slane %v881, 7
      %v1162 = vrot.slane %v882, 7
      %v1163 = vrot.slane %v883, 7
      %v1164 = vrot.slane %v884, 7
      %v1165 = vrot.slane %v885, 7
      %v1166 = vrot.slane %v886, 7
      %v1167 = vrot.slane %v887, 7
      %v1168 = vrot.slane %v888, 7
      %v1169 = vrot.slane %v889, 7
      %v1170 = vrot.slane %v890, 7
      %v1171 = vrot.slane %v891, 7
      %v1172 = vrot.slane %v892, 7
      %v1173 = vrot.slane %v893, 7
      %v1174 = vrot.slane %v894, 7
      %v1175 = vrot.slane %v895, 7
      %v1176 = vrot.slane %v896, 7
      %v1177 = vrot.slane %v897, 7
      %v1178 = vrot.slane %v898, 7
      %vm1179 = vcmp.lt.s32.totalorder %v711, 1
      %v1180 = vsel %vm1179, %v1177, %v1178
      %v1181 = vsel %vm1179, %v1176, %v1177
      %v1182 = vsel %vm1179, %v1175, %v1176
      %v1183 = vsel %vm1179, %v1174, %v1175
      %v1184 = vsel %vm1179, %v1173, %v1174
      %v1185 = vsel %vm1179, %v1172, %v1173
      %v1186 = vsel %vm1179, %v1171, %v1172
      %v1187 = vsel %vm1179, %v1170, %v1171
      %v1188 = vsel %vm1179, %v1169, %v1170
      %v1189 = vsel %vm1179, %v1168, %v1169
      %v1190 = vsel %vm1179, %v1167, %v1168
      %v1191 = vsel %vm1179, %v1166, %v1167
      %v1192 = vsel %vm1179, %v1165, %v1166
      %v1193 = vsel %vm1179, %v1164, %v1165
      %v1194 = vsel %vm1179, %v1163, %v1164
      %v1195 = vsel %vm1179, %v1162, %v1163
      %v1196 = vsel %vm1179, %v1161, %v1162
      %v1197 = vsel %vm1179, %v1160, %v1161
      %v1198 = vsel %vm1179, %v1159, %v1160
      %v1199 = vsel %vm1179, %v1178, %v1159
      %v1200 = vsel %vm1139, 1, 0
      %v1201 = vsel %vm1140, 1, 0
      %v1202 = vsel %vm1141, 1, 0
      %v1203 = vsel %vm1142, 1, 0
      %v1204 = vsel %vm1143, 1, 0
      %v1205 = vsel %vm1144, 1, 0
      %v1206 = vsel %vm1145, 1, 0
      %v1207 = vsel %vm1146, 1, 0
      %v1208 = vsel %vm1147, 1, 0
      %v1209 = vsel %vm1148, 1, 0
      %v1210 = vsel %vm1149, 1, 0
      %v1211 = vsel %vm1150, 1, 0
      %v1212 = vsel %vm1151, 1, 0
      %v1213 = vsel %vm1152, 1, 0
      %v1214 = vsel %vm1153, 1, 0
      %v1215 = vsel %vm1154, 1, 0
      %v1216 = vsel %vm1155, 1, 0
      %v1217 = vsel %vm1156, 1, 0
      %v1218 = vsel %vm1157, 1, 0
      %v1219 = vsel %vm1158, 1, 0
      %vm1220 = vcmp.eq.s32.totalorder %v1200, 1
      %vm1221 = vcmp.eq.s32.totalorder %v1201, 1
      %vm1222 = vcmp.eq.s32.totalorder %v1202, 1
      %vm1223 = vcmp.eq.s32.totalorder %v1203, 1
      %vm1224 = vcmp.eq.s32.totalorder %v1204, 1
      %vm1225 = vcmp.eq.s32.totalorder %v1205, 1
      %vm1226 = vcmp.eq.s32.totalorder %v1206, 1
      %vm1227 = vcmp.eq.s32.totalorder %v1207, 1
      %vm1228 = vcmp.eq.s32.totalorder %v1208, 1
      %vm1229 = vcmp.eq.s32.totalorder %v1209, 1
      %vm1230 = vcmp.eq.s32.totalorder %v1210, 1
      %vm1231 = vcmp.eq.s32.totalorder %v1211, 1
      %vm1232 = vcmp.eq.s32.totalorder %v1212, 1
      %vm1233 = vcmp.eq.s32.totalorder %v1213, 1
      %vm1234 = vcmp.eq.s32.totalorder %v1214, 1
      %vm1235 = vcmp.eq.s32.totalorder %v1215, 1
      %vm1236 = vcmp.eq.s32.totalorder %v1216, 1
      %vm1237 = vcmp.eq.s32.totalorder %v1217, 1
      %vm1238 = vcmp.eq.s32.totalorder %v1218, 1
      %vm1239 = vcmp.eq.s32.totalorder %v1219, 1
      %v1240 = vsel %vm1220, %v1199, 0.0
      %v1241 = vsel %vm1221, %v1198, 0.0
      %v1242 = vsel %vm1222, %v1197, 0.0
      %v1243 = vsel %vm1223, %v1196, 0.0
      %v1244 = vsel %vm1224, %v1195, 0.0
      %v1245 = vsel %vm1225, %v1194, 0.0
      %v1246 = vsel %vm1226, %v1193, 0.0
      %v1247 = vsel %vm1227, %v1192, 0.0
      %v1248 = vsel %vm1228, %v1191, 0.0
      %v1249 = vsel %vm1229, %v1190, 0.0
      %v1250 = vsel %vm1230, %v1189, 0.0
      %v1251 = vsel %vm1231, %v1188, 0.0
      %v1252 = vsel %vm1232, %v1187, 0.0
      %v1253 = vsel %vm1233, %v1186, 0.0
      %v1254 = vsel %vm1234, %v1185, 0.0
      %v1255 = vsel %vm1235, %v1184, 0.0
      %v1256 = vsel %vm1236, %v1183, 0.0
      %v1257 = vsel %vm1237, %v1182, 0.0
      %v1258 = vsel %vm1238, %v1181, 0.0
      %v1259 = vsel %vm1239, %v1180, 0.0
      %vm1260 = vcmp.ne.s32.totalorder %v1119, 15
      %vm1261 = vcmp.ne.s32.totalorder %v1120, 15
      %vm1262 = vcmp.ne.s32.totalorder %v1121, 15
      %vm1263 = vcmp.ne.s32.totalorder %v1122, 15
      %vm1264 = vcmp.ne.s32.totalorder %v1123, 15
      %vm1265 = vcmp.ne.s32.totalorder %v1124, 15
      %vm1266 = vcmp.ne.s32.totalorder %v1125, 15
      %vm1267 = vcmp.ne.s32.totalorder %v1126, 15
      %vm1268 = vcmp.ne.s32.totalorder %v1127, 15
      %vm1269 = vcmp.ne.s32.totalorder %v1128, 15
      %vm1270 = vcmp.ne.s32.totalorder %v1129, 15
      %vm1271 = vcmp.ne.s32.totalorder %v1130, 15
      %vm1272 = vcmp.ne.s32.totalorder %v1131, 15
      %vm1273 = vcmp.ne.s32.totalorder %v1132, 15
      %vm1274 = vcmp.ne.s32.totalorder %v1133, 15
      %vm1275 = vcmp.ne.s32.totalorder %v1134, 15
      %vm1276 = vcmp.ne.s32.totalorder %v1135, 15
      %vm1277 = vcmp.ne.s32.totalorder %v1136, 15
      %vm1278 = vcmp.ne.s32.totalorder %v1137, 15
      %vm1279 = vcmp.ne.s32.totalorder %v1138, 15
      %v1280 = vrot.slane %v879, 1
      %v1281 = vrot.slane %v880, 1
      %v1282 = vrot.slane %v881, 1
      %v1283 = vrot.slane %v882, 1
      %v1284 = vrot.slane %v883, 1
      %v1285 = vrot.slane %v884, 1
      %v1286 = vrot.slane %v885, 1
      %v1287 = vrot.slane %v886, 1
      %v1288 = vrot.slane %v887, 1
      %v1289 = vrot.slane %v888, 1
      %v1290 = vrot.slane %v889, 1
      %v1291 = vrot.slane %v890, 1
      %v1292 = vrot.slane %v891, 1
      %v1293 = vrot.slane %v892, 1
      %v1294 = vrot.slane %v893, 1
      %v1295 = vrot.slane %v894, 1
      %v1296 = vrot.slane %v895, 1
      %v1297 = vrot.slane %v896, 1
      %v1298 = vrot.slane %v897, 1
      %v1299 = vrot.slane %v898, 1
      %vm1300 = vcmp.lt.s32.totalorder %v711, 7
      %v1301 = vsel %vm1300, %v1298, %v1299
      %v1302 = vsel %vm1300, %v1297, %v1298
      %v1303 = vsel %vm1300, %v1296, %v1297
      %v1304 = vsel %vm1300, %v1295, %v1296
      %v1305 = vsel %vm1300, %v1294, %v1295
      %v1306 = vsel %vm1300, %v1293, %v1294
      %v1307 = vsel %vm1300, %v1292, %v1293
      %v1308 = vsel %vm1300, %v1291, %v1292
      %v1309 = vsel %vm1300, %v1290, %v1291
      %v1310 = vsel %vm1300, %v1289, %v1290
      %v1311 = vsel %vm1300, %v1288, %v1289
      %v1312 = vsel %vm1300, %v1287, %v1288
      %v1313 = vsel %vm1300, %v1286, %v1287
      %v1314 = vsel %vm1300, %v1285, %v1286
      %v1315 = vsel %vm1300, %v1284, %v1285
      %v1316 = vsel %vm1300, %v1283, %v1284
      %v1317 = vsel %vm1300, %v1282, %v1283
      %v1318 = vsel %vm1300, %v1281, %v1282
      %v1319 = vsel %vm1300, %v1280, %v1281
      %v1320 = vsel %vm1300, %v1299, %v1280
      %v1321 = vsel %vm1260, 1, 0
      %v1322 = vsel %vm1261, 1, 0
      %v1323 = vsel %vm1262, 1, 0
      %v1324 = vsel %vm1263, 1, 0
      %v1325 = vsel %vm1264, 1, 0
      %v1326 = vsel %vm1265, 1, 0
      %v1327 = vsel %vm1266, 1, 0
      %v1328 = vsel %vm1267, 1, 0
      %v1329 = vsel %vm1268, 1, 0
      %v1330 = vsel %vm1269, 1, 0
      %v1331 = vsel %vm1270, 1, 0
      %v1332 = vsel %vm1271, 1, 0
      %v1333 = vsel %vm1272, 1, 0
      %v1334 = vsel %vm1273, 1, 0
      %v1335 = vsel %vm1274, 1, 0
      %v1336 = vsel %vm1275, 1, 0
      %v1337 = vsel %vm1276, 1, 0
      %v1338 = vsel %vm1277, 1, 0
      %v1339 = vsel %vm1278, 1, 0
      %v1340 = vsel %vm1279, 1, 0
      %vm1341 = vcmp.eq.s32.totalorder %v1321, 1
      %vm1342 = vcmp.eq.s32.totalorder %v1322, 1
      %vm1343 = vcmp.eq.s32.totalorder %v1323, 1
      %vm1344 = vcmp.eq.s32.totalorder %v1324, 1
      %vm1345 = vcmp.eq.s32.totalorder %v1325, 1
      %vm1346 = vcmp.eq.s32.totalorder %v1326, 1
      %vm1347 = vcmp.eq.s32.totalorder %v1327, 1
      %vm1348 = vcmp.eq.s32.totalorder %v1328, 1
      %vm1349 = vcmp.eq.s32.totalorder %v1329, 1
      %vm1350 = vcmp.eq.s32.totalorder %v1330, 1
      %vm1351 = vcmp.eq.s32.totalorder %v1331, 1
      %vm1352 = vcmp.eq.s32.totalorder %v1332, 1
      %vm1353 = vcmp.eq.s32.totalorder %v1333, 1
      %vm1354 = vcmp.eq.s32.totalorder %v1334, 1
      %vm1355 = vcmp.eq.s32.totalorder %v1335, 1
      %vm1356 = vcmp.eq.s32.totalorder %v1336, 1
      %vm1357 = vcmp.eq.s32.totalorder %v1337, 1
      %vm1358 = vcmp.eq.s32.totalorder %v1338, 1
      %vm1359 = vcmp.eq.s32.totalorder %v1339, 1
      %vm1360 = vcmp.eq.s32.totalorder %v1340, 1
      %v1361 = vsel %vm1341, %v1319, 0.0
      %v1362 = vsel %vm1342, %v1318, 0.0
      %v1363 = vsel %vm1343, %v1317, 0.0
      %v1364 = vsel %vm1344, %v1316, 0.0
      %v1365 = vsel %vm1345, %v1315, 0.0
      %v1366 = vsel %vm1346, %v1314, 0.0
      %v1367 = vsel %vm1347, %v1313, 0.0
      %v1368 = vsel %vm1348, %v1312, 0.0
      %v1369 = vsel %vm1349, %v1311, 0.0
      %v1370 = vsel %vm1350, %v1310, 0.0
      %v1371 = vsel %vm1351, %v1309, 0.0
      %v1372 = vsel %vm1352, %v1308, 0.0
      %v1373 = vsel %vm1353, %v1307, 0.0
      %v1374 = vsel %vm1354, %v1306, 0.0
      %v1375 = vsel %vm1355, %v1305, 0.0
      %v1376 = vsel %vm1356, %v1304, 0.0
      %v1377 = vsel %vm1357, %v1303, 0.0
      %v1378 = vsel %vm1358, %v1302, 0.0
      %v1379 = vsel %vm1359, %v1301, 0.0
      %v1380 = vsel %vm1360, %v1320, 0.0
      %1401 = vrot.lane.b32.xlu0 %v879, 4
      %v1402 = vpop.permute.xlu0 %1401
      %1403 = vrot.lane.b32.xlu0 %v880, 4
      %v1404 = vpop.permute.xlu0 %1403
      %1405 = vrot.lane.b32.xlu0 %v881, 4
      %v1406 = vpop.permute.xlu0 %1405
      %1407 = vrot.lane.b32.xlu0 %v882, 4
      %v1408 = vpop.permute.xlu0 %1407
      %1409 = vrot.lane.b32.xlu0 %v883, 4
      %v1410 = vpop.permute.xlu0 %1409
      %1411 = vrot.lane.b32.xlu0 %v884, 4
      %v1412 = vpop.permute.xlu0 %1411
      %1413 = vrot.lane.b32.xlu0 %v885, 4
      %v1414 = vpop.permute.xlu0 %1413
      %1415 = vrot.lane.b32.xlu0 %v886, 4
      %v1416 = vpop.permute.xlu0 %1415
      %1417 = vrot.lane.b32.xlu0 %v887, 4
      %v1418 = vpop.permute.xlu0 %1417
      %1419 = vrot.lane.b32.xlu0 %v888, 4
      %v1420 = vpop.permute.xlu0 %1419
      %1421 = vrot.lane.b32.xlu0 %v889, 4
      %v1422 = vpop.permute.xlu0 %1421
      %1423 = vrot.lane.b32.xlu0 %v890, 4
      %v1424 = vpop.permute.xlu0 %1423
      %1425 = vrot.lane.b32.xlu0 %v891, 4
      %v1426 = vpop.permute.xlu0 %1425
      %1427 = vrot.lane.b32.xlu0 %v892, 4
      %v1428 = vpop.permute.xlu0 %1427
      %1429 = vrot.lane.b32.xlu0 %v893, 4
      %v1430 = vpop.permute.xlu0 %1429
      %1431 = vrot.lane.b32.xlu0 %v894, 4
      %v1432 = vpop.permute.xlu0 %1431
      %1433 = vrot.lane.b32.xlu0 %v895, 4
      %v1434 = vpop.permute.xlu0 %1433
      %1435 = vrot.lane.b32.xlu0 %v896, 4
      %v1436 = vpop.permute.xlu0 %1435
      %1437 = vrot.lane.b32.xlu0 %v897, 4
      %v1438 = vpop.permute.xlu0 %1437
      %1439 = vrot.lane.b32.xlu0 %v898, 4
      %v1440 = vpop.permute.xlu0 %1439
      %1481 = vrot.lane.b32.xlu0 %v1361, 8
      %v1482 = vpop.permute.xlu0 %1481
      %1483 = vrot.lane.b32.xlu0 %v1362, 8
      %v1484 = vpop.permute.xlu0 %1483
      %1485 = vrot.lane.b32.xlu0 %v1363, 8
      %v1486 = vpop.permute.xlu0 %1485
      %1487 = vrot.lane.b32.xlu0 %v1364, 8
      %v1488 = vpop.permute.xlu0 %1487
      %1489 = vrot.lane.b32.xlu0 %v1365, 8
      %v1490 = vpop.permute.xlu0 %1489
      %1491 = vrot.lane.b32.xlu0 %v1366, 8
      %v1492 = vpop.permute.xlu0 %1491
      %1493 = vrot.lane.b32.xlu0 %v1367, 8
      %v1494 = vpop.permute.xlu0 %1493
      %1495 = vrot.lane.b32.xlu0 %v1368, 8
      %v1496 = vpop.permute.xlu0 %1495
      %1497 = vrot.lane.b32.xlu0 %v1369, 8
      %v1498 = vpop.permute.xlu0 %1497
      %1499 = vrot.lane.b32.xlu0 %v1370, 8
      %v1500 = vpop.permute.xlu0 %1499
      %1501 = vrot.lane.b32.xlu0 %v1371, 8
      %v1502 = vpop.permute.xlu0 %1501
      %1503 = vrot.lane.b32.xlu0 %v1372, 8
      %v1504 = vpop.permute.xlu0 %1503
      %1505 = vrot.lane.b32.xlu0 %v1373, 8
      %v1506 = vpop.permute.xlu0 %1505
      %1507 = vrot.lane.b32.xlu0 %v1374, 8
      %v1508 = vpop.permute.xlu0 %1507
      %1509 = vrot.lane.b32.xlu0 %v1375, 8
      %v1510 = vpop.permute.xlu0 %1509
      %1511 = vrot.lane.b32.xlu0 %v1376, 8
      %v1512 = vpop.permute.xlu0 %1511
      %1513 = vrot.lane.b32.xlu0 %v1377, 8
      %v1514 = vpop.permute.xlu0 %1513
      %1515 = vrot.lane.b32.xlu0 %v1378, 8
      %v1516 = vpop.permute.xlu0 %1515
      %1517 = vrot.lane.b32.xlu0 %v1379, 8
      %v1518 = vpop.permute.xlu0 %1517
      %1519 = vrot.lane.b32.xlu0 %v1380, 8
      %v1520 = vpop.permute.xlu0 %1519
      %vm1541 = vcmask 31744
      %v1542 = vsel %vm1541, %v1240, %v1402
      %v1543 = vsel %vm1541, %v1241, %v1404
      %v1544 = vsel %vm1541, %v1242, %v1406
      %v1545 = vsel %vm1541, %v1243, %v1408
      %v1546 = vsel %vm1541, %v1244, %v1410
      %v1547 = vsel %vm1541, %v1245, %v1412
      %v1548 = vsel %vm1541, %v1246, %v1414
      %v1549 = vsel %vm1541, %v1247, %v1416
      %v1550 = vsel %vm1541, %v1248, %v1418
      %v1551 = vsel %vm1541, %v1249, %v1420
      %v1552 = vsel %vm1541, %v1250, %v1422
      %v1553 = vsel %vm1541, %v1251, %v1424
      %v1554 = vsel %vm1541, %v1252, %v1426
      %v1555 = vsel %vm1541, %v1253, %v1428
      %v1556 = vsel %vm1541, %v1254, %v1430
      %v1557 = vsel %vm1541, %v1255, %v1432
      %v1558 = vsel %vm1541, %v1256, %v1434
      %v1559 = vsel %vm1541, %v1257, %v1436
      %v1560 = vsel %vm1541, %v1258, %v1438
      %v1561 = vsel %vm1541, %v1259, %v1440
      %vm1562 = vcmask 64512
      %v1563 = vsel %vm1562, %v1542, %v1482
      %v1564 = vsel %vm1562, %v1543, %v1484
      %v1565 = vsel %vm1562, %v1544, %v1486
      %v1566 = vsel %vm1562, %v1545, %v1488
      %v1567 = vsel %vm1562, %v1546, %v1490
      %v1568 = vsel %vm1562, %v1547, %v1492
      %v1569 = vsel %vm1562, %v1548, %v1494
      %v1570 = vsel %vm1562, %v1549, %v1496
      %v1571 = vsel %vm1562, %v1550, %v1498
      %v1572 = vsel %vm1562, %v1551, %v1500
      %v1573 = vsel %vm1562, %v1552, %v1502
      %v1574 = vsel %vm1562, %v1553, %v1504
      %v1575 = vsel %vm1562, %v1554, %v1506
      %v1576 = vsel %vm1562, %v1555, %v1508
      %v1577 = vsel %vm1562, %v1556, %v1510
      %v1578 = vsel %vm1562, %v1557, %v1512
      %v1579 = vsel %vm1562, %v1558, %v1514
      %v1580 = vsel %vm1562, %v1559, %v1516
      %v1581 = vsel %vm1562, %v1560, %v1518
      %v1582 = vsel %vm1562, %v1561, %v1520
      %v1583 = vpack.c.bf16 %v1564, %v1563
      %v1584 = vpack.c.bf16 %v1566, %v1565
      %v1585 = vpack.c.bf16 %v1568, %v1567
      %v1586 = vpack.c.bf16 %v1570, %v1569
      %v1587 = vpack.c.bf16 %v1572, %v1571
      %v1588 = vpack.c.bf16 %v1574, %v1573
      %v1589 = vpack.c.bf16 %v1576, %v1575
      %v1590 = vpack.c.bf16 %v1578, %v1577
      %v1591 = vpack.c.bf16 %v1580, %v1579
      %v1592 = vpack.c.bf16 %v1582, %v1581
      %v1593 = vld [vmem:[%s4] sm:$0xf]
      %v1594 = vld [vmem:[%s4 + $0x4] sm:$0x3]
      %s1595 = scalar_lea.vmem %s4, 8
      %v1596 = vld [vmem:[%s1595] sm:$0xf]
      %v1597 = vld [vmem:[%s1595 + $0x4] sm:$0x3]
      %v1600 = vunpack.c.l.b16 %v1596
      %v1601 = vunpack.c.l.b16 %v1597
      %v1602 = vpack.c.b16 %v1601, %v1600
      %vm1603 = vcmask 97280
      %v1605 = vsel %vm1603, %v1584, 0
      %v1608 = vsel %vm1603, %v1585, 0
      %v1611 = vsel %vm1603, %v1586, 0
      %v1614 = vsel %vm1603, %v1587, 0
      %v1617 = vsel %vm1603, %v1588, 0
      %v1620 = vsel %vm1603, %v1589, 0
      %v1623 = vsel %vm1603, %v1590, 0
      %v1626 = vsel %vm1603, %v1591, 0
      %vm1628 = vcmask 1045504
      %v1630 = vsel %vm1628, %v1602, 0
      %1632 = vmatprep.subr.bf16.mxu0 0
      %1633 = vmatpush1.bf16.msra.mxu0 0
      %1634 = vmatprep.subr.bf16.mxu0 0
      %1635 = vmatpush1.bf16.msra.mxu0 0
      %1636 = vmatprep.subr.bf16.mxu0 0
      %1637 = vmatpush1.bf16.msra.mxu0 0
      %1638 = vmatprep.subr.bf16.mxu0 0
      %1639 = vmatpush1.bf16.msra.mxu0 0
      %1640 = vmatprep.subr.bf16.mxu0 0
      %1641 = vmatpush1.bf16.msra.mxu0 0
      %1642 = vmatprep.subr.bf16.mxu0 0
      %1643 = vmatpush1.bf16.msra.mxu0 0
      %1644 = vmatprep.subr.bf16.mxu0 0
      %1645 = vmatpush1.bf16.msra.mxu0 0
      %1646 = vmatprep.subr.bf16.mxu0 0
      %1647 = vmatpush1.bf16.msra.mxu0 %v1630
      %1648 = vmatprep.subr.bf16.mxu0 0
      %1649 = vmatpush2.bf16.msra.mxu0 0
      %1650 = vmatprep.subr.bf16.mxu0 0
      %1651 = vmatpush2.bf16.msra.mxu0 0
      %1652 = vmatprep.subr.bf16.mxu0 0
      %1653 = vmatpush2.bf16.msra.mxu0 0
      %1654 = vmatprep.subr.bf16.mxu0 0
      %1655 = vmatpush2.bf16.msra.mxu0 0
      %1656 = vmatprep.subr.bf16.mxu0 0
      %1657 = vmatpush2.bf16.msra.mxu0 0
      %1658 = vmatprep.subr.bf16.mxu0 0
      %1659 = vmatpush2.bf16.msra.mxu0 0
      %1660 = vmatprep.subr.bf16.mxu0 0
      %1661 = vmatpush2.bf16.msra.mxu0 0
      %1662 = vmatprep.subr.bf16.mxu0 0
      %1663 = vmatpush2.bf16.msra.mxu0 0
      %1664 = vmatprep.mubr.bf16.mxu0 0
      %1665 = vmatmul.mubr.bf16.gmra.mxu0 %v1605
      %v1666 = vpop.f32.mrf.mxu0
      %v1667 = vadd.f32 0.0, %v1666
      %v1668 = vpop.f32.mrf.mxu0
      %v1669 = vpop.f32.mrf.mxu0
      %v1670 = vadd.f32 0.0, %v1669
      %v1671 = vpop.f32.mrf.mxu0
      %1672 = vmatprep.mubr.bf16.mxu0 0
      %1673 = vmatmul.mubr.bf16.gmra.mxu0 %v1608
      %v1674 = vpop.f32.mrf.mxu0
      %v1675 = vadd.f32 0.0, %v1674
      %v1676 = vpop.f32.mrf.mxu0
      %v1677 = vpop.f32.mrf.mxu0
      %v1678 = vadd.f32 0.0, %v1677
      %v1679 = vpop.f32.mrf.mxu0
      %1680 = vmatprep.mubr.bf16.mxu0 0
      %1681 = vmatmul.mubr.bf16.gmra.mxu0 %v1611
      %v1682 = vpop.f32.mrf.mxu0
      %v1683 = vadd.f32 0.0, %v1682
      %v1684 = vpop.f32.mrf.mxu0
      %v1685 = vpop.f32.mrf.mxu0
      %v1686 = vadd.f32 0.0, %v1685
      %v1687 = vpop.f32.mrf.mxu0
      %1688 = vmatprep.mubr.bf16.mxu0 0
      %1689 = vmatmul.mubr.bf16.gmra.mxu0 %v1614
      %v1690 = vpop.f32.mrf.mxu0
      %v1691 = vadd.f32 0.0, %v1690
      %v1692 = vpop.f32.mrf.mxu0
      %v1693 = vpop.f32.mrf.mxu0
      %v1694 = vadd.f32 0.0, %v1693
      %v1695 = vpop.f32.mrf.mxu0
      %1696 = vmatprep.mubr.bf16.mxu0 0
      %1697 = vmatmul.mubr.bf16.gmra.mxu0 %v1617
      %v1698 = vpop.f32.mrf.mxu0
      %v1699 = vadd.f32 0.0, %v1698
      %v1700 = vpop.f32.mrf.mxu0
      %v1701 = vpop.f32.mrf.mxu0
      %v1702 = vadd.f32 0.0, %v1701
      %v1703 = vpop.f32.mrf.mxu0
      %1704 = vmatprep.mubr.bf16.mxu0 0
      %1705 = vmatmul.mubr.bf16.gmra.mxu0 %v1620
      %v1706 = vpop.f32.mrf.mxu0
      %v1707 = vadd.f32 0.0, %v1706
      %v1708 = vpop.f32.mrf.mxu0
      %v1709 = vpop.f32.mrf.mxu0
      %v1710 = vadd.f32 0.0, %v1709
      %v1711 = vpop.f32.mrf.mxu0
      %1712 = vmatprep.mubr.bf16.mxu0 0
      %1713 = vmatmul.mubr.bf16.gmra.mxu0 %v1623
      %v1714 = vpop.f32.mrf.mxu0
      %v1715 = vadd.f32 0.0, %v1714
      %v1716 = vpop.f32.mrf.mxu0
      %v1717 = vpop.f32.mrf.mxu0
      %v1718 = vadd.f32 0.0, %v1717
      %v1719 = vpop.f32.mrf.mxu0
      %1720 = vmatprep.mubr.bf16.mxu0 0
      %1721 = vmatmul.mubr.bf16.gmra.mxu0 %v1626
      %v1722 = vpop.f32.mrf.mxu0
      %v1723 = vadd.f32 0.0, %v1722
      %v1724 = vpop.f32.mrf.mxu0
      %v1725 = vpop.f32.mrf.mxu0
      %v1726 = vadd.f32 0.0, %v1725
      %v1727 = vpop.f32.mrf.mxu0
      %1728 = vdwg.mxu0
      %v1731 = vunpack.c.l.b16 %v1593
      %v1732 = vunpack.c.l.b16 %v1594
      %v1733 = vpack.c.b16 %v1732, %v1731
      %v1735 = vsel %vm1603, %v1583, 0
      %v1738 = vsel %vm1628, %v1733, 0
      %1740 = vmatprep.subr.bf16.mxu0 0
      %1741 = vmatpush1.bf16.msra.mxu0 0
      %1742 = vmatprep.subr.bf16.mxu0 0
      %1743 = vmatpush1.bf16.msra.mxu0 0
      %1744 = vmatprep.subr.bf16.mxu0 0
      %1745 = vmatpush1.bf16.msra.mxu0 0
      %1746 = vmatprep.subr.bf16.mxu0 0
      %1747 = vmatpush1.bf16.msra.mxu0 0
      %1748 = vmatprep.subr.bf16.mxu0 0
      %1749 = vmatpush1.bf16.msra.mxu0 0
      %1750 = vmatprep.subr.bf16.mxu0 0
      %1751 = vmatpush1.bf16.msra.mxu0 0
      %1752 = vmatprep.subr.bf16.mxu0 0
      %1753 = vmatpush1.bf16.msra.mxu0 0
      %1754 = vmatprep.subr.bf16.mxu0 0
      %1755 = vmatpush1.bf16.msra.mxu0 %v1738
      %1756 = vmatprep.subr.bf16.mxu0 0
      %1757 = vmatpush2.bf16.msra.mxu0 0
      %1758 = vmatprep.subr.bf16.mxu0 0
      %1759 = vmatpush2.bf16.msra.mxu0 0
      %1760 = vmatprep.subr.bf16.mxu0 0
      %1761 = vmatpush2.bf16.msra.mxu0 0
      %1762 = vmatprep.subr.bf16.mxu0 0
      %1763 = vmatpush2.bf16.msra.mxu0 0
      %1764 = vmatprep.subr.bf16.mxu0 0
      %1765 = vmatpush2.bf16.msra.mxu0 0
      %1766 = vmatprep.subr.bf16.mxu0 0
      %1767 = vmatpush2.bf16.msra.mxu0 0
      %1768 = vmatprep.subr.bf16.mxu0 0
      %1769 = vmatpush2.bf16.msra.mxu0 0
      %1770 = vmatprep.subr.bf16.mxu0 0
      %1771 = vmatpush2.bf16.msra.mxu0 0
      %1772 = vmatprep.mubr.bf16.mxu0 0
      %1773 = vmatmul.mubr.bf16.gmra.mxu0 %v1735
      %v1774 = vpop.f32.mrf.mxu0
      %v1775 = vadd.f32 %v1667, %v1774
      %v1776 = vpop.f32.mrf.mxu0
      %v1777 = vpop.f32.mrf.mxu0
      %v1778 = vadd.f32 %v1670, %v1777
      %v1779 = vpop.f32.mrf.mxu0
      %1780 = vmatprep.mubr.bf16.mxu0 0
      %1781 = vmatmul.mubr.bf16.gmra.mxu0 %v1605
      %v1782 = vpop.f32.mrf.mxu0
      %v1783 = vadd.f32 %v1675, %v1782
      %v1784 = vpop.f32.mrf.mxu0
      %v1785 = vpop.f32.mrf.mxu0
      %v1786 = vadd.f32 %v1678, %v1785
      %v1787 = vpop.f32.mrf.mxu0
      %1788 = vmatprep.mubr.bf16.mxu0 0
      %1789 = vmatmul.mubr.bf16.gmra.mxu0 %v1608
      %v1790 = vpop.f32.mrf.mxu0
      %v1791 = vadd.f32 %v1683, %v1790
      %v1792 = vpop.f32.mrf.mxu0
      %v1793 = vpop.f32.mrf.mxu0
      %v1794 = vadd.f32 %v1686, %v1793
      %v1795 = vpop.f32.mrf.mxu0
      %1796 = vmatprep.mubr.bf16.mxu0 0
      %1797 = vmatmul.mubr.bf16.gmra.mxu0 %v1611
      %v1798 = vpop.f32.mrf.mxu0
      %v1799 = vadd.f32 %v1691, %v1798
      %v1800 = vpop.f32.mrf.mxu0
      %v1801 = vpop.f32.mrf.mxu0
      %v1802 = vadd.f32 %v1694, %v1801
      %v1803 = vpop.f32.mrf.mxu0
      %1804 = vmatprep.mubr.bf16.mxu0 0
      %1805 = vmatmul.mubr.bf16.gmra.mxu0 %v1614
      %v1806 = vpop.f32.mrf.mxu0
      %v1807 = vadd.f32 %v1699, %v1806
      %v1808 = vpop.f32.mrf.mxu0
      %v1809 = vpop.f32.mrf.mxu0
      %v1810 = vadd.f32 %v1702, %v1809
      %v1811 = vpop.f32.mrf.mxu0
      %1812 = vmatprep.mubr.bf16.mxu0 0
      %1813 = vmatmul.mubr.bf16.gmra.mxu0 %v1617
      %v1814 = vpop.f32.mrf.mxu0
      %v1815 = vadd.f32 %v1707, %v1814
      %v1816 = vpop.f32.mrf.mxu0
      %v1817 = vpop.f32.mrf.mxu0
      %v1818 = vadd.f32 %v1710, %v1817
      %v1819 = vpop.f32.mrf.mxu0
      %1820 = vmatprep.mubr.bf16.mxu0 0
      %1821 = vmatmul.mubr.bf16.gmra.mxu0 %v1620
      %v1822 = vpop.f32.mrf.mxu0
      %v1823 = vadd.f32 %v1715, %v1822
      %v1824 = vpop.f32.mrf.mxu0
      %v1825 = vpop.f32.mrf.mxu0
      %v1826 = vadd.f32 %v1718, %v1825
      %v1827 = vpop.f32.mrf.mxu0
      %1828 = vmatprep.mubr.bf16.mxu0 0
      %1829 = vmatmul.mubr.bf16.gmra.mxu0 %v1623
      %v1830 = vpop.f32.mrf.mxu0
      %v1831 = vadd.f32 %v1723, %v1830
      %v1832 = vpop.f32.mrf.mxu0
      %v1833 = vpop.f32.mrf.mxu0
      %v1834 = vadd.f32 %v1726, %v1833
      %v1835 = vpop.f32.mrf.mxu0
      %1836 = vdwg.mxu0
      %s1837 = scalar_lea.vmem %s4, 16
      %v1838 = vld [vmem:[%s1837] sm:$0xf]
      %v1839 = vld [vmem:[%s1837 + $0x4] sm:$0x3]
      %v1842 = vunpack.c.l.b16 %v1838
      %v1843 = vunpack.c.l.b16 %v1839
      %v1844 = vpack.c.b16 %v1843, %v1842
      %v1846 = vsel %vm1603, %v1592, 0
      %v1849 = vsel %vm1628, %v1844, 0
      %1851 = vmatprep.subr.bf16.mxu0 0
      %1852 = vmatpush1.bf16.msra.mxu0 0
      %1853 = vmatprep.subr.bf16.mxu0 0
      %1854 = vmatpush1.bf16.msra.mxu0 0
      %1855 = vmatprep.subr.bf16.mxu0 0
      %1856 = vmatpush1.bf16.msra.mxu0 0
      %1857 = vmatprep.subr.bf16.mxu0 0
      %1858 = vmatpush1.bf16.msra.mxu0 0
      %1859 = vmatprep.subr.bf16.mxu0 0
      %1860 = vmatpush1.bf16.msra.mxu0 0
      %1861 = vmatprep.subr.bf16.mxu0 0
      %1862 = vmatpush1.bf16.msra.mxu0 0
      %1863 = vmatprep.subr.bf16.mxu0 0
      %1864 = vmatpush1.bf16.msra.mxu0 0
      %1865 = vmatprep.subr.bf16.mxu0 0
      %1866 = vmatpush1.bf16.msra.mxu0 %v1849
      %1867 = vmatprep.subr.bf16.mxu0 0
      %1868 = vmatpush2.bf16.msra.mxu0 0
      %1869 = vmatprep.subr.bf16.mxu0 0
      %1870 = vmatpush2.bf16.msra.mxu0 0
      %1871 = vmatprep.subr.bf16.mxu0 0
      %1872 = vmatpush2.bf16.msra.mxu0 0
      %1873 = vmatprep.subr.bf16.mxu0 0
      %1874 = vmatpush2.bf16.msra.mxu0 0
      %1875 = vmatprep.subr.bf16.mxu0 0
      %1876 = vmatpush2.bf16.msra.mxu0 0
      %1877 = vmatprep.subr.bf16.mxu0 0
      %1878 = vmatpush2.bf16.msra.mxu0 0
      %1879 = vmatprep.subr.bf16.mxu0 0
      %1880 = vmatpush2.bf16.msra.mxu0 0
      %1881 = vmatprep.subr.bf16.mxu0 0
      %1882 = vmatpush2.bf16.msra.mxu0 0
      %1883 = vmatprep.mubr.bf16.mxu0 0
      %1884 = vmatmul.mubr.bf16.gmra.mxu0 %v1608
      %v1885 = vpop.f32.mrf.mxu0
      %v1886 = vadd.f32 0.0, %v1885
      %v1887 = vpop.f32.mrf.mxu0
      %v1888 = vpop.f32.mrf.mxu0
      %v1889 = vadd.f32 0.0, %v1888
      %v1890 = vpop.f32.mrf.mxu0
      %1891 = vmatprep.mubr.bf16.mxu0 0
      %1892 = vmatmul.mubr.bf16.gmra.mxu0 %v1611
      %v1893 = vpop.f32.mrf.mxu0
      %v1894 = vadd.f32 0.0, %v1893
      %v1895 = vpop.f32.mrf.mxu0
      %v1896 = vpop.f32.mrf.mxu0
      %v1897 = vadd.f32 0.0, %v1896
      %v1898 = vpop.f32.mrf.mxu0
      %1899 = vmatprep.mubr.bf16.mxu0 0
      %1900 = vmatmul.mubr.bf16.gmra.mxu0 %v1614
      %v1901 = vpop.f32.mrf.mxu0
      %v1902 = vadd.f32 0.0, %v1901
      %v1903 = vpop.f32.mrf.mxu0
      %v1904 = vpop.f32.mrf.mxu0
      %v1905 = vadd.f32 0.0, %v1904
      %v1906 = vpop.f32.mrf.mxu0
      %1907 = vmatprep.mubr.bf16.mxu0 0
      %1908 = vmatmul.mubr.bf16.gmra.mxu0 %v1617
      %v1909 = vpop.f32.mrf.mxu0
      %v1910 = vadd.f32 0.0, %v1909
      %v1911 = vpop.f32.mrf.mxu0
      %v1912 = vpop.f32.mrf.mxu0
      %v1913 = vadd.f32 0.0, %v1912
      %v1914 = vpop.f32.mrf.mxu0
      %1915 = vmatprep.mubr.bf16.mxu0 0
      %1916 = vmatmul.mubr.bf16.gmra.mxu0 %v1620
      %v1917 = vpop.f32.mrf.mxu0
      %v1918 = vadd.f32 0.0, %v1917
      %v1919 = vpop.f32.mrf.mxu0
      %v1920 = vpop.f32.mrf.mxu0
      %v1921 = vadd.f32 0.0, %v1920
      %v1922 = vpop.f32.mrf.mxu0
      %1923 = vmatprep.mubr.bf16.mxu0 0
      %1924 = vmatmul.mubr.bf16.gmra.mxu0 %v1623
      %v1925 = vpop.f32.mrf.mxu0
      %v1926 = vadd.f32 0.0, %v1925
      %v1927 = vpop.f32.mrf.mxu0
      %v1928 = vpop.f32.mrf.mxu0
      %v1929 = vadd.f32 0.0, %v1928
      %v1930 = vpop.f32.mrf.mxu0
      %1931 = vmatprep.mubr.bf16.mxu0 0
      %1932 = vmatmul.mubr.bf16.gmra.mxu0 %v1626
      %v1933 = vpop.f32.mrf.mxu0
      %v1934 = vadd.f32 0.0, %v1933
      %v1935 = vpop.f32.mrf.mxu0
      %v1936 = vpop.f32.mrf.mxu0
      %v1937 = vadd.f32 0.0, %v1936
      %v1938 = vpop.f32.mrf.mxu0
      %1939 = vmatprep.mubr.bf16.mxu0 0
      %1940 = vmatmul.mubr.bf16.gmra.mxu0 %v1846
      %v1941 = vpop.f32.mrf.mxu0
      %v1942 = vadd.f32 0.0, %v1941
      %v1943 = vpop.f32.mrf.mxu0
      %v1944 = vpop.f32.mrf.mxu0
      %v1945 = vadd.f32 0.0, %v1944
      %v1946 = vpop.f32.mrf.mxu0
      %1947 = vdwg.mxu0
      %v1948 = vadd.f32 %v1775, %v1886
      %v1949 = vadd.f32 %v1778, %v1889
      %v1950 = vadd.f32 %v1783, %v1894
      %v1951 = vadd.f32 %v1786, %v1897
      %v1952 = vadd.f32 %v1791, %v1902
      %v1953 = vadd.f32 %v1794, %v1905
      %v1954 = vadd.f32 %v1799, %v1910
      %v1955 = vadd.f32 %v1802, %v1913
      %v1956 = vadd.f32 %v1807, %v1918
      %v1957 = vadd.f32 %v1810, %v1921
      %v1958 = vadd.f32 %v1815, %v1926
      %v1959 = vadd.f32 %v1818, %v1929
      %v1960 = vadd.f32 %v1823, %v1934
      %v1961 = vadd.f32 %v1826, %v1937
      %v1962 = vadd.f32 %v1831, %v1942
      %v1963 = vadd.f32 %v1834, %v1945
      %v1964 = vld [vmem:[%s7] sm:$0x1]
      %v1966 = vlaneseq
      %v1967 = vshrl.u32 %v1966, 7
      %v1968 = vsub.s32 0, %v1967
      %v1969 = vrot.slane %v1964, %v1968
      %v1971 = vadd.f32 %v1948, %v1969
      %v1972 = vadd.f32 %v1949, %v1969
      %v1973 = vadd.f32 %v1950, %v1969
      %v1974 = vadd.f32 %v1951, %v1969
      %v1975 = vadd.f32 %v1952, %v1969
      %v1976 = vadd.f32 %v1953, %v1969
      %v1977 = vadd.f32 %v1954, %v1969
      %v1978 = vadd.f32 %v1955, %v1969
      %v1979 = vadd.f32 %v1956, %v1969
      %v1980 = vadd.f32 %v1957, %v1969
      %v1981 = vadd.f32 %v1958, %v1969
      %v1982 = vadd.f32 %v1959, %v1969
      %v1983 = vadd.f32 %v1960, %v1969
      %v1984 = vadd.f32 %v1961, %v1969
      %v1985 = vadd.f32 %v1962, %v1969
      %v1986 = vadd.f32 %v1963, %v1969
      %v1987 = vmax.f32 %v1971, 0.0
      %v1988 = vmax.f32 %v1972, 0.0
      %v1989 = vmax.f32 %v1973, 0.0
      %v1990 = vmax.f32 %v1974, 0.0
      %v1991 = vmax.f32 %v1975, 0.0
      %v1992 = vmax.f32 %v1976, 0.0
      %v1993 = vmax.f32 %v1977, 0.0
      %v1994 = vmax.f32 %v1978, 0.0
      %v1995 = vmax.f32 %v1979, 0.0
      %v1996 = vmax.f32 %v1980, 0.0
      %v1997 = vmax.f32 %v1981, 0.0
      %v1998 = vmax.f32 %v1982, 0.0
      %v1999 = vmax.f32 %v1983, 0.0
      %v2000 = vmax.f32 %v1984, 0.0
      %v2001 = vmax.f32 %v1985, 0.0
      %v2002 = vmax.f32 %v1986, 0.0
      %v2003 = vpack.c.bf16 %v1988, %v1987
      %v2004 = vpack.c.bf16 %v1990, %v1989
      %v2005 = vpack.c.bf16 %v1992, %v1991
      %v2006 = vpack.c.bf16 %v1994, %v1993
      %v2007 = vpack.c.bf16 %v1996, %v1995
      %v2008 = vpack.c.bf16 %v1998, %v1997
      %v2009 = vpack.c.bf16 %v2000, %v1999
      %v2010 = vpack.c.bf16 %v2002, %v2001
      %v2011 = vld [vmem:[%s5] sm:$0x3]
      %v2012 = vld [vmem:[%s8] sm:$0x1]
      %v2014 = vlaneseq
      %v2015 = vshrl.u32 %v2014, 7
      %v2016 = vsub.s32 0, %v2015
      %v2017 = vrot.slane %v2012, %v2016
      %v2020 = vsel %vm1541, %v2003, 0
      %v2023 = vsel %vm1541, %v2004, 0
      %v2026 = vsel %vm1541, %v2005, 0
      %v2029 = vsel %vm1541, %v2006, 0
      %v2032 = vsel %vm1541, %v2007, 0
      %v2035 = vsel %vm1541, %v2008, 0
      %v2038 = vsel %vm1541, %v2009, 0
      %v2041 = vsel %vm1541, %v2010, 0
      %vm2043 = vcmask 1041408
      %v2045 = vsel %vm2043, %v2011, 0
      %2047 = vmatprep.subr.bf16.mxu0 0
      %2048 = vmatpush1.bf16.msra.mxu0 0
      %2049 = vmatprep.subr.bf16.mxu0 0
      %2050 = vmatpush1.bf16.msra.mxu0 0
      %2051 = vmatprep.subr.bf16.mxu0 0
      %2052 = vmatpush1.bf16.msra.mxu0 0
      %2053 = vmatprep.subr.bf16.mxu0 0
      %2054 = vmatpush1.bf16.msra.mxu0 0
      %2055 = vmatprep.subr.bf16.mxu0 0
      %2056 = vmatpush1.bf16.msra.mxu0 0
      %2057 = vmatprep.subr.bf16.mxu0 0
      %2058 = vmatpush1.bf16.msra.mxu0 0
      %2059 = vmatprep.subr.bf16.mxu0 0
      %2060 = vmatpush1.bf16.msra.mxu0 0
      %2061 = vmatprep.subr.bf16.mxu0 0
      %2062 = vmatpush1.bf16.msra.mxu0 %v2045
      %2063 = vmatprep.subr.bf16.mxu0 0
      %2064 = vmatpush2.bf16.msra.mxu0 0
      %2065 = vmatprep.subr.bf16.mxu0 0
      %2066 = vmatpush2.bf16.msra.mxu0 0
      %2067 = vmatprep.subr.bf16.mxu0 0
      %2068 = vmatpush2.bf16.msra.mxu0 0
      %2069 = vmatprep.subr.bf16.mxu0 0
      %2070 = vmatpush2.bf16.msra.mxu0 0
      %2071 = vmatprep.subr.bf16.mxu0 0
      %2072 = vmatpush2.bf16.msra.mxu0 0
      %2073 = vmatprep.subr.bf16.mxu0 0
      %2074 = vmatpush2.bf16.msra.mxu0 0
      %2075 = vmatprep.subr.bf16.mxu0 0
      %2076 = vmatpush2.bf16.msra.mxu0 0
      %2077 = vmatprep.subr.bf16.mxu0 0
      %2078 = vmatpush2.bf16.msra.mxu0 0
      %2079 = vmatprep.mubr.bf16.mxu0 0
      %2080 = vmatmul.mubr.bf16.gmra.mxu0 %v2020
      %v2081 = vpop.f32.mrf.mxu0
      %v2082 = vadd.f32 %v2017, %v2081
      %v2083 = vpop.f32.mrf.mxu0
      %v2084 = vpop.f32.mrf.mxu0
      %v2085 = vadd.f32 %v2017, %v2084
      %v2086 = vpop.f32.mrf.mxu0
      %2087 = vmatprep.mubr.bf16.mxu0 0
      %2088 = vmatmul.mubr.bf16.gmra.mxu0 %v2023
      %v2089 = vpop.f32.mrf.mxu0
      %v2090 = vadd.f32 %v2017, %v2089
      %v2091 = vpop.f32.mrf.mxu0
      %v2092 = vpop.f32.mrf.mxu0
      %v2093 = vadd.f32 %v2017, %v2092
      %v2094 = vpop.f32.mrf.mxu0
      %2095 = vmatprep.mubr.bf16.mxu0 0
      %2096 = vmatmul.mubr.bf16.gmra.mxu0 %v2026
      %v2097 = vpop.f32.mrf.mxu0
      %v2098 = vadd.f32 %v2017, %v2097
      %v2099 = vpop.f32.mrf.mxu0
      %v2100 = vpop.f32.mrf.mxu0
      %v2101 = vadd.f32 %v2017, %v2100
      %v2102 = vpop.f32.mrf.mxu0
      %2103 = vmatprep.mubr.bf16.mxu0 0
      %2104 = vmatmul.mubr.bf16.gmra.mxu0 %v2029
      %v2105 = vpop.f32.mrf.mxu0
      %v2106 = vadd.f32 %v2017, %v2105
      %v2107 = vpop.f32.mrf.mxu0
      %v2108 = vpop.f32.mrf.mxu0
      %v2109 = vadd.f32 %v2017, %v2108
      %v2110 = vpop.f32.mrf.mxu0
      %2111 = vmatprep.mubr.bf16.mxu0 0
      %2112 = vmatmul.mubr.bf16.gmra.mxu0 %v2032
      %v2113 = vpop.f32.mrf.mxu0
      %v2114 = vadd.f32 %v2017, %v2113
      %v2115 = vpop.f32.mrf.mxu0
      %v2116 = vpop.f32.mrf.mxu0
      %v2117 = vadd.f32 %v2017, %v2116
      %v2118 = vpop.f32.mrf.mxu0
      %2119 = vmatprep.mubr.bf16.mxu0 0
      %2120 = vmatmul.mubr.bf16.gmra.mxu0 %v2035
      %v2121 = vpop.f32.mrf.mxu0
      %v2122 = vadd.f32 %v2017, %v2121
      %v2123 = vpop.f32.mrf.mxu0
      %v2124 = vpop.f32.mrf.mxu0
      %v2125 = vadd.f32 %v2017, %v2124
      %v2126 = vpop.f32.mrf.mxu0
      %2127 = vmatprep.mubr.bf16.mxu0 0
      %2128 = vmatmul.mubr.bf16.gmra.mxu0 %v2038
      %v2129 = vpop.f32.mrf.mxu0
      %v2130 = vadd.f32 %v2017, %v2129
      %v2131 = vpop.f32.mrf.mxu0
      %v2132 = vpop.f32.mrf.mxu0
      %v2133 = vadd.f32 %v2017, %v2132
      %v2134 = vpop.f32.mrf.mxu0
      %2135 = vmatprep.mubr.bf16.mxu0 0
      %2136 = vmatmul.mubr.bf16.gmra.mxu0 %v2041
      %v2137 = vpop.f32.mrf.mxu0
      %v2138 = vadd.f32 %v2017, %v2137
      %v2139 = vpop.f32.mrf.mxu0
      %v2140 = vpop.f32.mrf.mxu0
      %v2141 = vadd.f32 %v2017, %v2140
      %v2142 = vpop.f32.mrf.mxu0
      %2143 = vdwg.mxu0
      %v2144 = vadd.f32 %v2082, %v501
      %v2145 = vadd.f32 %v2085, %v502
      %v2146 = vadd.f32 %v2090, %v503
      %v2147 = vadd.f32 %v2093, %v504
      %v2148 = vadd.f32 %v2098, %v505
      %v2149 = vadd.f32 %v2101, %v506
      %v2150 = vadd.f32 %v2106, %v507
      %v2151 = vadd.f32 %v2109, %v508
      %v2152 = vadd.f32 %v2114, %v509
      %v2153 = vadd.f32 %v2117, %v510
      %v2154 = vadd.f32 %v2122, %v511
      %v2155 = vadd.f32 %v2125, %v512
      %v2156 = vadd.f32 %v2130, %v513
      %v2157 = vadd.f32 %v2133, %v514
      %v2158 = vadd.f32 %v2138, %v515
      %v2159 = vadd.f32 %v2141, %v516
      %v2160 = vmax.f32 %v2144, 0.0
      %v2161 = vmax.f32 %v2145, 0.0
      %v2162 = vmax.f32 %v2146, 0.0
      %v2163 = vmax.f32 %v2147, 0.0
      %v2164 = vmax.f32 %v2148, 0.0
      %v2165 = vmax.f32 %v2149, 0.0
      %v2166 = vmax.f32 %v2150, 0.0
      %v2167 = vmax.f32 %v2151, 0.0
      %v2168 = vmax.f32 %v2152, 0.0
      %v2169 = vmax.f32 %v2153, 0.0
      %v2170 = vmax.f32 %v2154, 0.0
      %v2171 = vmax.f32 %v2155, 0.0
      %v2172 = vmax.f32 %v2156, 0.0
      %v2173 = vmax.f32 %v2157, 0.0
      %v2174 = vmax.f32 %v2158, 0.0
      %v2175 = vmax.f32 %v2159, 0.0
      %2176 = vst.msk [vmem:[%s498] sm:$0xff] %vm546, %v2160
      %2177 = vst.msk [vmem:[%s498 + $0x8] sm:$0xff] %vm546, %v2161
      %2178 = vst.msk [vmem:[%s498 + $0x10] sm:$0xff] %vm546, %v2162
      %2179 = vst.msk [vmem:[%s498 + $0x18] sm:$0xff] %vm546, %v2163
      %2180 = vst.msk [vmem:[%s498 + $0x20] sm:$0xff] %vm546, %v2164
      %2181 = vst.msk [vmem:[%s498 + $0x28] sm:$0xff] %vm546, %v2165
      %2182 = vst.msk [vmem:[%s498 + $0x30] sm:$0xff] %vm546, %v2166
      %2183 = vst.msk [vmem:[%s498 + $0x38] sm:$0xff] %vm546, %v2167
      %2184 = vst.msk [vmem:[%s498 + $0x40] sm:$0xff] %vm546, %v2168
      %2185 = vst.msk [vmem:[%s498 + $0x48] sm:$0xff] %vm546, %v2169
      %2186 = vst.msk [vmem:[%s498 + $0x50] sm:$0xff] %vm546, %v2170
      %2187 = vst.msk [vmem:[%s498 + $0x58] sm:$0xff] %vm546, %v2171
      %2188 = vst.msk [vmem:[%s498 + $0x60] sm:$0xff] %vm546, %v2172
      %2189 = vst.msk [vmem:[%s498 + $0x68] sm:$0xff] %vm546, %v2173
      %2190 = vst.msk [vmem:[%s498 + $0x70] sm:$0xff] %vm546, %v2174
      %2191 = vst.msk [vmem:[%s498 + $0x78] sm:$0xff] %vm546, %v2175
      %s2192 = smul.u32 16, %s25
      %p2193 = scmp.lt.s32.totalorder %s24, 1
      %s2194 = scalar_select %p2193, %s24, 1
      %p2195 = scmp.lt.s32.totalorder %s2192, 31
      %s2196 = scalar_select %p2195, %s2192, 31
      %s2197 = smul.addr %s2194, 32
      %s2198 = sadd.s32 %s2196, %s2197
      %s2199 = smul.addr %s2198, 8
      %s2200 = scalar_lea.vmem %s9, %s2199
      // Predicated region
      $region57: #{tpu_custom_call.1} parent=55 // pred_check
        %p2201 = pneg %p278
      $region58: #{tpu_custom_call.1} parent=55 // pred_check_branch
        %2203 = sbr.rel (%p2201) target = $region60
      $region59: #{tpu_custom_call.1} parent=55 // pred_region
        %s2204 = smul.u32 16, %s25
      $region60: #{tpu_custom_call.1} parent=55 // pred_fallthru
        _
    $region56: #{tpu_custom_call.1} parent=5 // pred_fallthru
      _
    %p2205 = scmp.le.s32.totalorder 2, %s15
    // Predicated region
    $region61: #{tpu_custom_call.1} parent=5 // pred_check
      %p2206 = pneg %p2205
    $region62: #{tpu_custom_call.1} parent=5 // pred_check_branch
      %2208 = sbr.rel (%p2206) target = $region64
    $region63: #{tpu_custom_call.1} parent=5 // pred_region
      %s2209 = ssub.s32 %s15, 2
      // Predicated region
      $region65: #{tpu_custom_call.1} parent=63 // pred_check
        %p2210 = pneg %p284
      $region66: #{tpu_custom_call.1} parent=63 // pred_check_branch
        %2212 = sbr.rel (%p2210) target = $region68
      $region67: #{tpu_custom_call.1} parent=63 // pred_region
        %s2213 = smul.u32 16, %s27
        %p2214 = scmp.lt.s32.totalorder %s26, 1
        %s2215 = scalar_select %p2214, %s26, 1
        %p2216 = scmp.lt.s32.totalorder %s2213, 31
        %s2217 = scalar_select %p2216, %s2213, 31
        %s2218 = smul.addr %s2215, 32
        %s2219 = sadd.s32 %s2217, %s2218
        %s2220 = smul.addr %s2219, 8
        %s2221 = scalar_lea.vmem %s9, %s2220
      $region68: #{tpu_custom_call.1} parent=63 // pred_fallthru
        _
    $region64: #{tpu_custom_call.1} parent=5 // pred_fallthru
      _
  $region6: #{tpu_custom_call.1} parent=0 // loop_footer
    %s19 = sadd.s32 1, %s15
  $region7: #{tpu_custom_call.1} parent=0 // loop_footer_branch
    %14 = sbr.rel target = $region3
  $region8: #{tpu_custom_call.1} parent=0 // loop_exit
    _

</llo_original>
